<compile_context>
chip_gen: v7x
topology: tpu7x:2x2x1
jax: 0.10.0
libtpu: 0.0.40
codegen_flags: <defaults>
</compile_context>

<pallas_src>
import numpy as np
import jax
import jax.numpy as jnp
from jax import lax
from jax.experimental import pallas as pl
from jax.experimental.pallas import tpu as pltpu

POOL_SIZES = (2, 3, 5, 6)


def _bilinear_matrix(out_size, in_size):
    """Interpolation matrix A (out, in) matching F.interpolate(mode='bilinear',
    align_corners=False): up = A @ src (applied per spatial axis). Rows sum to 1."""
    A = np.zeros((out_size, in_size), dtype=np.float32)
    scale = in_size / out_size
    for o in range(out_size):
        src = (o + 0.5) * scale - 0.5
        src = max(src, 0.0)
        i0 = min(int(np.floor(src)), in_size - 1)
        frac = src - i0
        i1 = min(i0 + 1, in_size - 1)
        A[o, i0] += 1.0 - frac
        A[o, i1] += frac
    return A


def _build_constants(H, W):
    """Folded upsample matrix + per-level segment mask.

    Per pool size k (oh=H//k, ow=W//k, Wv=W-k+1) the kernel produces, for every
    anchor row i, the conv'd k x k max at ALL in-row positions q in [0, Wv).
    M_k (oh*Wv, H*W) carries the bilinear weights only on anchor columns
    q == j*k and zeros elsewhere, so anchor selection is folded exactly into
    the single upsample matmul.  Stacked over levels: mallT (Ntot, H*W);
    seg (4, Ntot) is 1 on each level's segment.
    """
    HW = H * W
    blocks, n_list = [], []
    for k in POOL_SIZES:
        oh, ow = H // k, W // k
        Wv = W - (k - 1)
        Ah = _bilinear_matrix(H, oh)                       # (H, oh)
        Aw = _bilinear_matrix(W, ow)                       # (W, ow)
        kt = np.kron(Ah, Aw).T.astype(np.float32)          # (oh*ow, HW)
        Mk = np.zeros((oh * Wv, HW), dtype=np.float32)
        for i in range(oh):
            for j in range(ow):
                Mk[i * Wv + j * k, :] = kt[i * ow + j, :]
        blocks.append(Mk)
        n_list.append(oh * Wv)
    mallT = np.concatenate(blocks, axis=0)                 # (Ntot, HW)
    ntot = mallT.shape[0]
    seg = np.zeros((len(POOL_SIZES), ntot), dtype=np.float32)
    off = 0
    for li, n in enumerate(n_list):
        seg[li, off:off + n] = 1.0
        off += n
    return seg, mallT


def _pick_batch_tile(B, C, HW):
    """Largest divisor of B that keeps >=2 grid steps when B >= 2 (so both v7x
    TensorCores get work) and keeps double-buffered in+out blocks small."""
    budget = 24 * 2 ** 20                                  # headroom under v7x 64 MiB/TC
    best = 1
    for bt in range(1, B + 1):
        if B % bt:
            continue
        if B >= 2 and B // bt < 2:
            continue
        if 2 * 4 * bt * (2 * C + 4) * HW <= budget:
            best = bt
    return best


def spp_block(x, w, b):
    """x: (B, C, H, W) f32;  w: (C,) conv1x1 weight;  b: scalar conv bias.
    Returns (B, C+4, H, W) = concat([layer1..layer4, x], channels)."""
    B, C, H, W = x.shape
    HW = H * W
    NL = len(POOL_SIZES)
    assert H >= max(POOL_SIZES) and W >= max(POOL_SIZES)

    seg_np, mall_np = _build_constants(H, W)
    seg = jnp.asarray(seg_np)                              # (4, Ntot)
    mall = jnp.asarray(mall_np)                            # (Ntot, HW)
    ntot = int(mall_np.shape[0])

    Bt = _pick_batch_tile(B, C, HW)
    grid = (B // Bt,)

    x_flat = x.reshape(B, C, HW).astype(jnp.float32)       # lane-dense view
    w_col = w.reshape(C, 1).astype(jnp.float32)
    b_arr = jnp.reshape(b, (1,)).astype(jnp.float32)

    def kernel(x_ref, w_ref, b_ref, seg_ref, mall_ref, out_ref):
        x3 = x_ref[...]                                    # (Bt, C, HW) lane-dense
        wc = w_ref[...]                                    # (C, 1)

        parts = []
        for k in POOL_SIZES:
            oh = H // k
            Wv = W - (k - 1)
            # w-direction sliding max over the flat (h*W + w) lane axis.
            valid = HW - (k - 1)
            y = x3[:, :, 0:valid]
            for d in range(1, k):
                y = jnp.maximum(y, x3[:, :, d:d + valid])
            # h-direction max restricted to anchor rows (stride == kernel,
            # floor mode; no cross-row wrap positions), then the 1x1 conv as
            # an exact-f32 VPU contraction over channels.
            for i in range(oh):
                base = (i * k) * W
                z = y[:, :, base:base + Wv]
                for dh in range(1, k):
                    off = base + dh * W
                    z = jnp.maximum(z, y[:, :, off:off + Wv])
                parts.append(jnp.sum(z * wc, axis=1))      # (Bt, Wv)

        t = jnp.concatenate(parts, axis=-1)                # (Bt, Ntot)
        # All four upsampled layers for every batch row of this block come from
        # ONE MXU matmul; the zero rows/columns of mallT make anchor selection
        # exact, and fp32 contract precision keeps ~1e-6 parity with f32 ref.
        rows = [seg_ref[...] * t[bb:bb + 1, :] for bb in range(Bt)]
        s4 = rows[0] if Bt == 1 else jnp.concatenate(rows, axis=0)   # (4*Bt, Ntot)
        layers = jnp.dot(s4, mall_ref[...],
                         preferred_element_type=jnp.float32,
                         precision=lax.Precision.HIGHEST) + b_ref[0]  # (4*Bt, HW)

        for bb in range(Bt):
            out_ref[bb, 0:NL, :] = layers[4 * bb:4 * bb + 4, :].astype(out_ref.dtype)
        # Passthrough of x.  The module fixes the channel order [layers, x], so
        # this (dominant) store begins at sublane offset 4; a single contiguous
        # lane-dense store is still cheaper than an extra output reorder copy.
        out_ref[:, NL:NL + C, :] = x3.astype(out_ref.dtype)

    in_specs = [
        pl.BlockSpec((Bt, C, HW), lambda bi: (bi, 0, 0)),          # x (lane-dense)
        pl.BlockSpec((C, 1), lambda bi: (0, 0)),                   # conv1x1 weight
        pl.BlockSpec(memory_space=pltpu.MemorySpace.SMEM),         # conv bias scalar
        pl.BlockSpec(seg.shape, lambda bi: (0, 0)),                # level segment mask
        pl.BlockSpec(mall.shape, lambda bi: (0, 0)),               # folded upsample matrix
    ]
    out_spec = pl.BlockSpec((Bt, C + NL, HW), lambda bi: (bi, 0, 0))

    # Advisory cost estimate (memory-bound kernel) so XLA can overlap neighbours.
    flops = int(2 * B * NL * ntot * HW + 16 * B * C * HW)
    bytes_accessed = int(4 * (B * (2 * C + NL) * HW + ntot * HW + NL * ntot + C + 1))
    cost = pl.CostEstimate(flops=flops, transcendentals=0, bytes_accessed=bytes_accessed)

    # VMEM budget derived from actual usage, with headroom; capped well below
    # v7x's 64 MiB/TC physical VMEM.
    blk_bytes = 4 * Bt * (2 * C + NL) * HW
    const_bytes = 4 * (ntot * HW + NL * ntot + C)
    vmem_limit = int(min(48 * 2 ** 20,
                         max(16 * 2 ** 20, 4 * blk_bytes + 3 * const_bytes + (4 << 20))))

    out_flat = pl.pallas_call(
        kernel,
        out_shape=jax.ShapeDtypeStruct((B, C + NL, HW), jnp.float32),
        grid_spec=pltpu.PrefetchScalarGridSpec(
            num_scalar_prefetch=0,
            grid=grid,
            in_specs=in_specs,
            out_specs=out_spec,
        ),
        compiler_params=pltpu.CompilerParams(
            dimension_semantics=("parallel",),   # batch blocks split across TCs (v7x)
            vmem_limit_bytes=vmem_limit,
        ),
        cost_estimate=cost,
    )(x_flat, w_col, b_arr, seg, mall)

    return out_flat.reshape(B, C + NL, H, W)


def spp_block_ref(x, w, b):
    """Pure-JAX reference with identical semantics (for verification)."""
    B, C, H, W = x.shape
    outs = []
    for k in POOL_SIZES:
        oh, ow = H // k, W // k
        pooled = lax.reduce_window(x, -jnp.inf, lax.max,
                                   (1, 1, k, k), (1, 1, k, k), 'VALID')
        s = jnp.einsum('bchw,c->bhw', pooled, w,
                       precision=lax.Precision.HIGHEST) + b
        ah = jnp.asarray(_bilinear_matrix(H, oh))
        aw = jnp.asarray(_bilinear_matrix(W, ow))
        up = jnp.einsum('hi,bij,wj->bhw', ah, s, aw,
                        precision=lax.Precision.HIGHEST)
        outs.append(up[:, None])
    outs.append(x)
    return jnp.concatenate(outs, axis=1)


if __name__ == "__main__":
    key = jax.random.PRNGKey(0)
    kx, kw, kb = jax.random.split(key, 3)

    B, C, H, W = 2, 4, 16, 16
    x = jax.random.normal(kx, (B, C, H, W), dtype=jnp.float32)
    w = 0.1 * jax.random.normal(kw, (C,), dtype=jnp.float32)   # conv1x1 weight
    b = 0.1 * jax.random.normal(kb, (), dtype=jnp.float32)     # conv1x1 bias

    out = spp_block(x, w, b)
    out = jax.block_until_ready(out)

    ref = spp_block_ref(x, w, b)
    assert out.shape == (B, C + 4, H, W), out.shape
    # Exact pooling/selection, f32 VPU conv and fp32-precision MXU upsample
    # keep the kernel within ~1e-6 of the f32 reference.
    np.testing.assert_allclose(np.asarray(out), np.asarray(ref), rtol=1e-4, atol=1e-4)
    print("KERNEL_OK")
</pallas_src>

<mosaic_0001>
module attributes {stable_mosaic.version = 11 : i64} {
  func.func @kernel(%arg0: i32, %arg1: memref<1x4x256xf32, #tpu.memory_space<vmem>>, %arg2: memref<4x1xf32, #tpu.memory_space<vmem>>, %arg3: memref<1xf32, #tpu.memory_space<smem>>, %arg4: memref<4x248xf32, #tpu.memory_space<vmem>>, %arg5: memref<248x256xf32, #tpu.memory_space<vmem>>, %arg6: memref<1x8x256xf32, #tpu.memory_space<vmem>>) attributes {dimension_semantics = [#tpu.dimension_semantics<parallel>], iteration_bounds = array<i64: 2>, scalar_prefetch = 0 : i64, scratch_operands = 0 : i64, tpu.core_type = #tpu.core_type<tc>, window_params = [{transform_indices = @transform_0, window_bounds = array<i64: 1, 4, 256>}, {pipeline_mode = #tpu.pipeline_mode<synchronous>, transform_indices = @transform_1, window_bounds = array<i64: 4, 1>}, {transform_indices = @transform_2, window_bounds = array<i64: 1>}, {pipeline_mode = #tpu.pipeline_mode<synchronous>, transform_indices = @transform_3, window_bounds = array<i64: 4, 248>}, {pipeline_mode = #tpu.pipeline_mode<synchronous>, transform_indices = @transform_4, window_bounds = array<i64: 248, 256>}, {transform_indices = @transform_5, window_bounds = array<i64: 1, 8, 256>}]} {
    %c0 = arith.constant 0 : index
    %c0_0 = arith.constant 0 : index
    %c0_1 = arith.constant 0 : index
    %0 = vector.load %arg1[%c0, %c0_0, %c0_1] : memref<1x4x256xf32, #tpu.memory_space<vmem>>, vector<1x4x256xf32>
    %c0_2 = arith.constant 0 : index
    %c0_3 = arith.constant 0 : index
    %1 = vector.load %arg2[%c0_2, %c0_3] : memref<4x1xf32, #tpu.memory_space<vmem>>, vector<4x1xf32>
    %2 = vector.extract_strided_slice %0 {offsets = [0, 0, 0], sizes = [1, 4, 255], strides = [1, 1, 1]} : vector<1x4x256xf32> to vector<1x4x255xf32>
    %3 = vector.extract_strided_slice %0 {offsets = [0, 0, 1], sizes = [1, 4, 255], strides = [1, 1, 1]} : vector<1x4x256xf32> to vector<1x4x255xf32>
    %4 = arith.maximumf %2, %3 : vector<1x4x255xf32>
    %5 = vector.extract_strided_slice %4 {offsets = [0, 0, 0], sizes = [1, 4, 15], strides = [1, 1, 1]} : vector<1x4x255xf32> to vector<1x4x15xf32>
    %6 = vector.extract_strided_slice %4 {offsets = [0, 0, 16], sizes = [1, 4, 15], strides = [1, 1, 1]} : vector<1x4x255xf32> to vector<1x4x15xf32>
    %7 = arith.maximumf %5, %6 : vector<1x4x15xf32>
    %8 = vector.shape_cast %1 : vector<4x1xf32> to vector<1x4x1xf32>
    %9 = vector.broadcast %8 : vector<1x4x1xf32> to vector<1x4x15xf32>
    %10 = arith.mulf %7, %9 : vector<1x4x15xf32>
    %cst = arith.constant dense<0.000000e+00> : vector<1x15xf32>
    %11 = vector.multi_reduction <add>, %10, %cst [1] : vector<1x4x15xf32> to vector<1x15xf32>
    %12 = vector.extract_strided_slice %4 {offsets = [0, 0, 32], sizes = [1, 4, 15], strides = [1, 1, 1]} : vector<1x4x255xf32> to vector<1x4x15xf32>
    %13 = vector.extract_strided_slice %4 {offsets = [0, 0, 48], sizes = [1, 4, 15], strides = [1, 1, 1]} : vector<1x4x255xf32> to vector<1x4x15xf32>
    %14 = arith.maximumf %12, %13 : vector<1x4x15xf32>
    %15 = vector.shape_cast %1 : vector<4x1xf32> to vector<1x4x1xf32>
    %16 = vector.broadcast %15 : vector<1x4x1xf32> to vector<1x4x15xf32>
    %17 = arith.mulf %14, %16 : vector<1x4x15xf32>
    %cst_4 = arith.constant dense<0.000000e+00> : vector<1x15xf32>
    %18 = vector.multi_reduction <add>, %17, %cst_4 [1] : vector<1x4x15xf32> to vector<1x15xf32>
    %19 = vector.extract_strided_slice %4 {offsets = [0, 0, 64], sizes = [1, 4, 15], strides = [1, 1, 1]} : vector<1x4x255xf32> to vector<1x4x15xf32>
    %20 = vector.extract_strided_slice %4 {offsets = [0, 0, 80], sizes = [1, 4, 15], strides = [1, 1, 1]} : vector<1x4x255xf32> to vector<1x4x15xf32>
    %21 = arith.maximumf %19, %20 : vector<1x4x15xf32>
    %22 = vector.shape_cast %1 : vector<4x1xf32> to vector<1x4x1xf32>
    %23 = vector.broadcast %22 : vector<1x4x1xf32> to vector<1x4x15xf32>
    %24 = arith.mulf %21, %23 : vector<1x4x15xf32>
    %cst_5 = arith.constant dense<0.000000e+00> : vector<1x15xf32>
    %25 = vector.multi_reduction <add>, %24, %cst_5 [1] : vector<1x4x15xf32> to vector<1x15xf32>
    %26 = vector.extract_strided_slice %4 {offsets = [0, 0, 96], sizes = [1, 4, 15], strides = [1, 1, 1]} : vector<1x4x255xf32> to vector<1x4x15xf32>
    %27 = vector.extract_strided_slice %4 {offsets = [0, 0, 112], sizes = [1, 4, 15], strides = [1, 1, 1]} : vector<1x4x255xf32> to vector<1x4x15xf32>
    %28 = arith.maximumf %26, %27 : vector<1x4x15xf32>
    %29 = vector.shape_cast %1 : vector<4x1xf32> to vector<1x4x1xf32>
    %30 = vector.broadcast %29 : vector<1x4x1xf32> to vector<1x4x15xf32>
    %31 = arith.mulf %28, %30 : vector<1x4x15xf32>
    %cst_6 = arith.constant dense<0.000000e+00> : vector<1x15xf32>
    %32 = vector.multi_reduction <add>, %31, %cst_6 [1] : vector<1x4x15xf32> to vector<1x15xf32>
    %33 = vector.extract_strided_slice %4 {offsets = [0, 0, 128], sizes = [1, 4, 15], strides = [1, 1, 1]} : vector<1x4x255xf32> to vector<1x4x15xf32>
    %34 = vector.extract_strided_slice %4 {offsets = [0, 0, 144], sizes = [1, 4, 15], strides = [1, 1, 1]} : vector<1x4x255xf32> to vector<1x4x15xf32>
    %35 = arith.maximumf %33, %34 : vector<1x4x15xf32>
    %36 = vector.shape_cast %1 : vector<4x1xf32> to vector<1x4x1xf32>
    %37 = vector.broadcast %36 : vector<1x4x1xf32> to vector<1x4x15xf32>
    %38 = arith.mulf %35, %37 : vector<1x4x15xf32>
    %cst_7 = arith.constant dense<0.000000e+00> : vector<1x15xf32>
    %39 = vector.multi_reduction <add>, %38, %cst_7 [1] : vector<1x4x15xf32> to vector<1x15xf32>
    %40 = vector.extract_strided_slice %4 {offsets = [0, 0, 160], sizes = [1, 4, 15], strides = [1, 1, 1]} : vector<1x4x255xf32> to vector<1x4x15xf32>
    %41 = vector.extract_strided_slice %4 {offsets = [0, 0, 176], sizes = [1, 4, 15], strides = [1, 1, 1]} : vector<1x4x255xf32> to vector<1x4x15xf32>
    %42 = arith.maximumf %40, %41 : vector<1x4x15xf32>
    %43 = vector.shape_cast %1 : vector<4x1xf32> to vector<1x4x1xf32>
    %44 = vector.broadcast %43 : vector<1x4x1xf32> to vector<1x4x15xf32>
    %45 = arith.mulf %42, %44 : vector<1x4x15xf32>
    %cst_8 = arith.constant dense<0.000000e+00> : vector<1x15xf32>
    %46 = vector.multi_reduction <add>, %45, %cst_8 [1] : vector<1x4x15xf32> to vector<1x15xf32>
    %47 = vector.extract_strided_slice %4 {offsets = [0, 0, 192], sizes = [1, 4, 15], strides = [1, 1, 1]} : vector<1x4x255xf32> to vector<1x4x15xf32>
    %48 = vector.extract_strided_slice %4 {offsets = [0, 0, 208], sizes = [1, 4, 15], strides = [1, 1, 1]} : vector<1x4x255xf32> to vector<1x4x15xf32>
    %49 = arith.maximumf %47, %48 : vector<1x4x15xf32>
    %50 = vector.shape_cast %1 : vector<4x1xf32> to vector<1x4x1xf32>
    %51 = vector.broadcast %50 : vector<1x4x1xf32> to vector<1x4x15xf32>
    %52 = arith.mulf %49, %51 : vector<1x4x15xf32>
    %cst_9 = arith.constant dense<0.000000e+00> : vector<1x15xf32>
    %53 = vector.multi_reduction <add>, %52, %cst_9 [1] : vector<1x4x15xf32> to vector<1x15xf32>
    %54 = vector.extract_strided_slice %4 {offsets = [0, 0, 224], sizes = [1, 4, 15], strides = [1, 1, 1]} : vector<1x4x255xf32> to vector<1x4x15xf32>
    %55 = vector.extract_strided_slice %4 {offsets = [0, 0, 240], sizes = [1, 4, 15], strides = [1, 1, 1]} : vector<1x4x255xf32> to vector<1x4x15xf32>
    %56 = arith.maximumf %54, %55 : vector<1x4x15xf32>
    %57 = vector.shape_cast %1 : vector<4x1xf32> to vector<1x4x1xf32>
    %58 = vector.broadcast %57 : vector<1x4x1xf32> to vector<1x4x15xf32>
    %59 = arith.mulf %56, %58 : vector<1x4x15xf32>
    %cst_10 = arith.constant dense<0.000000e+00> : vector<1x15xf32>
    %60 = vector.multi_reduction <add>, %59, %cst_10 [1] : vector<1x4x15xf32> to vector<1x15xf32>
    %61 = vector.extract_strided_slice %0 {offsets = [0, 0, 0], sizes = [1, 4, 254], strides = [1, 1, 1]} : vector<1x4x256xf32> to vector<1x4x254xf32>
    %62 = vector.extract_strided_slice %0 {offsets = [0, 0, 1], sizes = [1, 4, 254], strides = [1, 1, 1]} : vector<1x4x256xf32> to vector<1x4x254xf32>
    %63 = arith.maximumf %61, %62 : vector<1x4x254xf32>
    %64 = vector.extract_strided_slice %0 {offsets = [0, 0, 2], sizes = [1, 4, 254], strides = [1, 1, 1]} : vector<1x4x256xf32> to vector<1x4x254xf32>
    %65 = arith.maximumf %63, %64 : vector<1x4x254xf32>
    %66 = vector.extract_strided_slice %65 {offsets = [0, 0, 0], sizes = [1, 4, 14], strides = [1, 1, 1]} : vector<1x4x254xf32> to vector<1x4x14xf32>
    %67 = vector.extract_strided_slice %65 {offsets = [0, 0, 16], sizes = [1, 4, 14], strides = [1, 1, 1]} : vector<1x4x254xf32> to vector<1x4x14xf32>
    %68 = arith.maximumf %66, %67 : vector<1x4x14xf32>
    %69 = vector.extract_strided_slice %65 {offsets = [0, 0, 32], sizes = [1, 4, 14], strides = [1, 1, 1]} : vector<1x4x254xf32> to vector<1x4x14xf32>
    %70 = arith.maximumf %68, %69 : vector<1x4x14xf32>
    %71 = vector.shape_cast %1 : vector<4x1xf32> to vector<1x4x1xf32>
    %72 = vector.broadcast %71 : vector<1x4x1xf32> to vector<1x4x14xf32>
    %73 = arith.mulf %70, %72 : vector<1x4x14xf32>
    %cst_11 = arith.constant dense<0.000000e+00> : vector<1x14xf32>
    %74 = vector.multi_reduction <add>, %73, %cst_11 [1] : vector<1x4x14xf32> to vector<1x14xf32>
    %75 = vector.extract_strided_slice %65 {offsets = [0, 0, 48], sizes = [1, 4, 14], strides = [1, 1, 1]} : vector<1x4x254xf32> to vector<1x4x14xf32>
    %76 = vector.extract_strided_slice %65 {offsets = [0, 0, 64], sizes = [1, 4, 14], strides = [1, 1, 1]} : vector<1x4x254xf32> to vector<1x4x14xf32>
    %77 = arith.maximumf %75, %76 : vector<1x4x14xf32>
    %78 = vector.extract_strided_slice %65 {offsets = [0, 0, 80], sizes = [1, 4, 14], strides = [1, 1, 1]} : vector<1x4x254xf32> to vector<1x4x14xf32>
    %79 = arith.maximumf %77, %78 : vector<1x4x14xf32>
    %80 = vector.shape_cast %1 : vector<4x1xf32> to vector<1x4x1xf32>
    %81 = vector.broadcast %80 : vector<1x4x1xf32> to vector<1x4x14xf32>
    %82 = arith.mulf %79, %81 : vector<1x4x14xf32>
    %cst_12 = arith.constant dense<0.000000e+00> : vector<1x14xf32>
    %83 = vector.multi_reduction <add>, %82, %cst_12 [1] : vector<1x4x14xf32> to vector<1x14xf32>
    %84 = vector.extract_strided_slice %65 {offsets = [0, 0, 96], sizes = [1, 4, 14], strides = [1, 1, 1]} : vector<1x4x254xf32> to vector<1x4x14xf32>
    %85 = vector.extract_strided_slice %65 {offsets = [0, 0, 112], sizes = [1, 4, 14], strides = [1, 1, 1]} : vector<1x4x254xf32> to vector<1x4x14xf32>
    %86 = arith.maximumf %84, %85 : vector<1x4x14xf32>
    %87 = vector.extract_strided_slice %65 {offsets = [0, 0, 128], sizes = [1, 4, 14], strides = [1, 1, 1]} : vector<1x4x254xf32> to vector<1x4x14xf32>
    %88 = arith.maximumf %86, %87 : vector<1x4x14xf32>
    %89 = vector.shape_cast %1 : vector<4x1xf32> to vector<1x4x1xf32>
    %90 = vector.broadcast %89 : vector<1x4x1xf32> to vector<1x4x14xf32>
    %91 = arith.mulf %88, %90 : vector<1x4x14xf32>
    %cst_13 = arith.constant dense<0.000000e+00> : vector<1x14xf32>
    %92 = vector.multi_reduction <add>, %91, %cst_13 [1] : vector<1x4x14xf32> to vector<1x14xf32>
    %93 = vector.extract_strided_slice %65 {offsets = [0, 0, 144], sizes = [1, 4, 14], strides = [1, 1, 1]} : vector<1x4x254xf32> to vector<1x4x14xf32>
    %94 = vector.extract_strided_slice %65 {offsets = [0, 0, 160], sizes = [1, 4, 14], strides = [1, 1, 1]} : vector<1x4x254xf32> to vector<1x4x14xf32>
    %95 = arith.maximumf %93, %94 : vector<1x4x14xf32>
    %96 = vector.extract_strided_slice %65 {offsets = [0, 0, 176], sizes = [1, 4, 14], strides = [1, 1, 1]} : vector<1x4x254xf32> to vector<1x4x14xf32>
    %97 = arith.maximumf %95, %96 : vector<1x4x14xf32>
    %98 = vector.shape_cast %1 : vector<4x1xf32> to vector<1x4x1xf32>
    %99 = vector.broadcast %98 : vector<1x4x1xf32> to vector<1x4x14xf32>
    %100 = arith.mulf %97, %99 : vector<1x4x14xf32>
    %cst_14 = arith.constant dense<0.000000e+00> : vector<1x14xf32>
    %101 = vector.multi_reduction <add>, %100, %cst_14 [1] : vector<1x4x14xf32> to vector<1x14xf32>
    %102 = vector.extract_strided_slice %65 {offsets = [0, 0, 192], sizes = [1, 4, 14], strides = [1, 1, 1]} : vector<1x4x254xf32> to vector<1x4x14xf32>
    %103 = vector.extract_strided_slice %65 {offsets = [0, 0, 208], sizes = [1, 4, 14], strides = [1, 1, 1]} : vector<1x4x254xf32> to vector<1x4x14xf32>
    %104 = arith.maximumf %102, %103 : vector<1x4x14xf32>
    %105 = vector.extract_strided_slice %65 {offsets = [0, 0, 224], sizes = [1, 4, 14], strides = [1, 1, 1]} : vector<1x4x254xf32> to vector<1x4x14xf32>
    %106 = arith.maximumf %104, %105 : vector<1x4x14xf32>
    %107 = vector.shape_cast %1 : vector<4x1xf32> to vector<1x4x1xf32>
    %108 = vector.broadcast %107 : vector<1x4x1xf32> to vector<1x4x14xf32>
    %109 = arith.mulf %106, %108 : vector<1x4x14xf32>
    %cst_15 = arith.constant dense<0.000000e+00> : vector<1x14xf32>
    %110 = vector.multi_reduction <add>, %109, %cst_15 [1] : vector<1x4x14xf32> to vector<1x14xf32>
    %111 = vector.extract_strided_slice %0 {offsets = [0, 0, 0], sizes = [1, 4, 252], strides = [1, 1, 1]} : vector<1x4x256xf32> to vector<1x4x252xf32>
    %112 = vector.extract_strided_slice %0 {offsets = [0, 0, 1], sizes = [1, 4, 252], strides = [1, 1, 1]} : vector<1x4x256xf32> to vector<1x4x252xf32>
    %113 = arith.maximumf %111, %112 : vector<1x4x252xf32>
    %114 = vector.extract_strided_slice %0 {offsets = [0, 0, 2], sizes = [1, 4, 252], strides = [1, 1, 1]} : vector<1x4x256xf32> to vector<1x4x252xf32>
    %115 = arith.maximumf %113, %114 : vector<1x4x252xf32>
    %116 = vector.extract_strided_slice %0 {offsets = [0, 0, 3], sizes = [1, 4, 252], strides = [1, 1, 1]} : vector<1x4x256xf32> to vector<1x4x252xf32>
    %117 = arith.maximumf %115, %116 : vector<1x4x252xf32>
    %118 = vector.extract_strided_slice %0 {offsets = [0, 0, 4], sizes = [1, 4, 252], strides = [1, 1, 1]} : vector<1x4x256xf32> to vector<1x4x252xf32>
    %119 = arith.maximumf %117, %118 : vector<1x4x252xf32>
    %120 = vector.extract_strided_slice %119 {offsets = [0, 0, 0], sizes = [1, 4, 12], strides = [1, 1, 1]} : vector<1x4x252xf32> to vector<1x4x12xf32>
    %121 = vector.extract_strided_slice %119 {offsets = [0, 0, 16], sizes = [1, 4, 12], strides = [1, 1, 1]} : vector<1x4x252xf32> to vector<1x4x12xf32>
    %122 = arith.maximumf %120, %121 : vector<1x4x12xf32>
    %123 = vector.extract_strided_slice %119 {offsets = [0, 0, 32], sizes = [1, 4, 12], strides = [1, 1, 1]} : vector<1x4x252xf32> to vector<1x4x12xf32>
    %124 = arith.maximumf %122, %123 : vector<1x4x12xf32>
    %125 = vector.extract_strided_slice %119 {offsets = [0, 0, 48], sizes = [1, 4, 12], strides = [1, 1, 1]} : vector<1x4x252xf32> to vector<1x4x12xf32>
    %126 = arith.maximumf %124, %125 : vector<1x4x12xf32>
    %127 = vector.extract_strided_slice %119 {offsets = [0, 0, 64], sizes = [1, 4, 12], strides = [1, 1, 1]} : vector<1x4x252xf32> to vector<1x4x12xf32>
    %128 = arith.maximumf %126, %127 : vector<1x4x12xf32>
    %129 = vector.shape_cast %1 : vector<4x1xf32> to vector<1x4x1xf32>
    %130 = vector.broadcast %129 : vector<1x4x1xf32> to vector<1x4x12xf32>
    %131 = arith.mulf %128, %130 : vector<1x4x12xf32>
    %cst_16 = arith.constant dense<0.000000e+00> : vector<1x12xf32>
    %132 = vector.multi_reduction <add>, %131, %cst_16 [1] : vector<1x4x12xf32> to vector<1x12xf32>
    %133 = vector.extract_strided_slice %119 {offsets = [0, 0, 80], sizes = [1, 4, 12], strides = [1, 1, 1]} : vector<1x4x252xf32> to vector<1x4x12xf32>
    %134 = vector.extract_strided_slice %119 {offsets = [0, 0, 96], sizes = [1, 4, 12], strides = [1, 1, 1]} : vector<1x4x252xf32> to vector<1x4x12xf32>
    %135 = arith.maximumf %133, %134 : vector<1x4x12xf32>
    %136 = vector.extract_strided_slice %119 {offsets = [0, 0, 112], sizes = [1, 4, 12], strides = [1, 1, 1]} : vector<1x4x252xf32> to vector<1x4x12xf32>
    %137 = arith.maximumf %135, %136 : vector<1x4x12xf32>
    %138 = vector.extract_strided_slice %119 {offsets = [0, 0, 128], sizes = [1, 4, 12], strides = [1, 1, 1]} : vector<1x4x252xf32> to vector<1x4x12xf32>
    %139 = arith.maximumf %137, %138 : vector<1x4x12xf32>
    %140 = vector.extract_strided_slice %119 {offsets = [0, 0, 144], sizes = [1, 4, 12], strides = [1, 1, 1]} : vector<1x4x252xf32> to vector<1x4x12xf32>
    %141 = arith.maximumf %139, %140 : vector<1x4x12xf32>
    %142 = vector.shape_cast %1 : vector<4x1xf32> to vector<1x4x1xf32>
    %143 = vector.broadcast %142 : vector<1x4x1xf32> to vector<1x4x12xf32>
    %144 = arith.mulf %141, %143 : vector<1x4x12xf32>
    %cst_17 = arith.constant dense<0.000000e+00> : vector<1x12xf32>
    %145 = vector.multi_reduction <add>, %144, %cst_17 [1] : vector<1x4x12xf32> to vector<1x12xf32>
    %146 = vector.extract_strided_slice %119 {offsets = [0, 0, 160], sizes = [1, 4, 12], strides = [1, 1, 1]} : vector<1x4x252xf32> to vector<1x4x12xf32>
    %147 = vector.extract_strided_slice %119 {offsets = [0, 0, 176], sizes = [1, 4, 12], strides = [1, 1, 1]} : vector<1x4x252xf32> to vector<1x4x12xf32>
    %148 = arith.maximumf %146, %147 : vector<1x4x12xf32>
    %149 = vector.extract_strided_slice %119 {offsets = [0, 0, 192], sizes = [1, 4, 12], strides = [1, 1, 1]} : vector<1x4x252xf32> to vector<1x4x12xf32>
    %150 = arith.maximumf %148, %149 : vector<1x4x12xf32>
    %151 = vector.extract_strided_slice %119 {offsets = [0, 0, 208], sizes = [1, 4, 12], strides = [1, 1, 1]} : vector<1x4x252xf32> to vector<1x4x12xf32>
    %152 = arith.maximumf %150, %151 : vector<1x4x12xf32>
    %153 = vector.extract_strided_slice %119 {offsets = [0, 0, 224], sizes = [1, 4, 12], strides = [1, 1, 1]} : vector<1x4x252xf32> to vector<1x4x12xf32>
    %154 = arith.maximumf %152, %153 : vector<1x4x12xf32>
    %155 = vector.shape_cast %1 : vector<4x1xf32> to vector<1x4x1xf32>
    %156 = vector.broadcast %155 : vector<1x4x1xf32> to vector<1x4x12xf32>
    %157 = arith.mulf %154, %156 : vector<1x4x12xf32>
    %cst_18 = arith.constant dense<0.000000e+00> : vector<1x12xf32>
    %158 = vector.multi_reduction <add>, %157, %cst_18 [1] : vector<1x4x12xf32> to vector<1x12xf32>
    %159 = vector.extract_strided_slice %0 {offsets = [0, 0, 0], sizes = [1, 4, 251], strides = [1, 1, 1]} : vector<1x4x256xf32> to vector<1x4x251xf32>
    %160 = vector.extract_strided_slice %0 {offsets = [0, 0, 1], sizes = [1, 4, 251], strides = [1, 1, 1]} : vector<1x4x256xf32> to vector<1x4x251xf32>
    %161 = arith.maximumf %159, %160 : vector<1x4x251xf32>
    %162 = vector.extract_strided_slice %0 {offsets = [0, 0, 2], sizes = [1, 4, 251], strides = [1, 1, 1]} : vector<1x4x256xf32> to vector<1x4x251xf32>
    %163 = arith.maximumf %161, %162 : vector<1x4x251xf32>
    %164 = vector.extract_strided_slice %0 {offsets = [0, 0, 3], sizes = [1, 4, 251], strides = [1, 1, 1]} : vector<1x4x256xf32> to vector<1x4x251xf32>
    %165 = arith.maximumf %163, %164 : vector<1x4x251xf32>
    %166 = vector.extract_strided_slice %0 {offsets = [0, 0, 4], sizes = [1, 4, 251], strides = [1, 1, 1]} : vector<1x4x256xf32> to vector<1x4x251xf32>
    %167 = arith.maximumf %165, %166 : vector<1x4x251xf32>
    %168 = vector.extract_strided_slice %0 {offsets = [0, 0, 5], sizes = [1, 4, 251], strides = [1, 1, 1]} : vector<1x4x256xf32> to vector<1x4x251xf32>
    %169 = arith.maximumf %167, %168 : vector<1x4x251xf32>
    %170 = vector.extract_strided_slice %169 {offsets = [0, 0, 0], sizes = [1, 4, 11], strides = [1, 1, 1]} : vector<1x4x251xf32> to vector<1x4x11xf32>
    %171 = vector.extract_strided_slice %169 {offsets = [0, 0, 16], sizes = [1, 4, 11], strides = [1, 1, 1]} : vector<1x4x251xf32> to vector<1x4x11xf32>
    %172 = arith.maximumf %170, %171 : vector<1x4x11xf32>
    %173 = vector.extract_strided_slice %169 {offsets = [0, 0, 32], sizes = [1, 4, 11], strides = [1, 1, 1]} : vector<1x4x251xf32> to vector<1x4x11xf32>
    %174 = arith.maximumf %172, %173 : vector<1x4x11xf32>
    %175 = vector.extract_strided_slice %169 {offsets = [0, 0, 48], sizes = [1, 4, 11], strides = [1, 1, 1]} : vector<1x4x251xf32> to vector<1x4x11xf32>
    %176 = arith.maximumf %174, %175 : vector<1x4x11xf32>
    %177 = vector.extract_strided_slice %169 {offsets = [0, 0, 64], sizes = [1, 4, 11], strides = [1, 1, 1]} : vector<1x4x251xf32> to vector<1x4x11xf32>
    %178 = arith.maximumf %176, %177 : vector<1x4x11xf32>
    %179 = vector.extract_strided_slice %169 {offsets = [0, 0, 80], sizes = [1, 4, 11], strides = [1, 1, 1]} : vector<1x4x251xf32> to vector<1x4x11xf32>
    %180 = arith.maximumf %178, %179 : vector<1x4x11xf32>
    %181 = vector.shape_cast %1 : vector<4x1xf32> to vector<1x4x1xf32>
    %182 = vector.broadcast %181 : vector<1x4x1xf32> to vector<1x4x11xf32>
    %183 = arith.mulf %180, %182 : vector<1x4x11xf32>
    %cst_19 = arith.constant dense<0.000000e+00> : vector<1x11xf32>
    %184 = vector.multi_reduction <add>, %183, %cst_19 [1] : vector<1x4x11xf32> to vector<1x11xf32>
    %185 = vector.extract_strided_slice %169 {offsets = [0, 0, 96], sizes = [1, 4, 11], strides = [1, 1, 1]} : vector<1x4x251xf32> to vector<1x4x11xf32>
    %186 = vector.extract_strided_slice %169 {offsets = [0, 0, 112], sizes = [1, 4, 11], strides = [1, 1, 1]} : vector<1x4x251xf32> to vector<1x4x11xf32>
    %187 = arith.maximumf %185, %186 : vector<1x4x11xf32>
    %188 = vector.extract_strided_slice %169 {offsets = [0, 0, 128], sizes = [1, 4, 11], strides = [1, 1, 1]} : vector<1x4x251xf32> to vector<1x4x11xf32>
    %189 = arith.maximumf %187, %188 : vector<1x4x11xf32>
    %190 = vector.extract_strided_slice %169 {offsets = [0, 0, 144], sizes = [1, 4, 11], strides = [1, 1, 1]} : vector<1x4x251xf32> to vector<1x4x11xf32>
    %191 = arith.maximumf %189, %190 : vector<1x4x11xf32>
    %192 = vector.extract_strided_slice %169 {offsets = [0, 0, 160], sizes = [1, 4, 11], strides = [1, 1, 1]} : vector<1x4x251xf32> to vector<1x4x11xf32>
    %193 = arith.maximumf %191, %192 : vector<1x4x11xf32>
    %194 = vector.extract_strided_slice %169 {offsets = [0, 0, 176], sizes = [1, 4, 11], strides = [1, 1, 1]} : vector<1x4x251xf32> to vector<1x4x11xf32>
    %195 = arith.maximumf %193, %194 : vector<1x4x11xf32>
    %196 = vector.shape_cast %1 : vector<4x1xf32> to vector<1x4x1xf32>
    %197 = vector.broadcast %196 : vector<1x4x1xf32> to vector<1x4x11xf32>
    %198 = arith.mulf %195, %197 : vector<1x4x11xf32>
    %cst_20 = arith.constant dense<0.000000e+00> : vector<1x11xf32>
    %199 = vector.multi_reduction <add>, %198, %cst_20 [1] : vector<1x4x11xf32> to vector<1x11xf32>
    %200 = tpu.concatenate %11, %18, %25, %32, %39, %46, %53, %60, %74, %83, %92, %101, %110, %132, %145, %158 in 1 : vector<1x15xf32>, vector<1x15xf32>, vector<1x15xf32>, vector<1x15xf32>, vector<1x15xf32>, vector<1x15xf32>, vector<1x15xf32>, vector<1x15xf32>, vector<1x14xf32>, vector<1x14xf32>, vector<1x14xf32>, vector<1x14xf32>, vector<1x14xf32>, vector<1x12xf32>, vector<1x12xf32>, vector<1x12xf32> -> vector<1x226xf32>
    %201 = tpu.concatenate %184, %199 in 1 : vector<1x11xf32>, vector<1x11xf32> -> vector<1x22xf32>
    %202 = tpu.concatenate %200, %201 in 1 : vector<1x226xf32>, vector<1x22xf32> -> vector<1x248xf32>
    %c0_21 = arith.constant 0 : index
    %c0_22 = arith.constant 0 : index
    %203 = vector.load %arg4[%c0_21, %c0_22] : memref<4x248xf32, #tpu.memory_space<vmem>>, vector<4x248xf32>
    %204 = vector.broadcast %202 : vector<1x248xf32> to vector<4x248xf32>
    %205 = arith.mulf %203, %204 : vector<4x248xf32>
    %c0_23 = arith.constant 0 : index
    %c0_24 = arith.constant 0 : index
    %206 = vector.load %arg5[%c0_23, %c0_24] : memref<248x256xf32, #tpu.memory_space<vmem>>, vector<248x256xf32>
    %cst_25 = arith.constant dense<0.000000e+00> : vector<4x256xf32>
    %207 = tpu.matmul %205, %206, %cst_25 {dimension_numbers = #tpu.dot_dimension_numbers<[1], [0], [0], [1], [0, 0, 1, 1], [], []>, precision = #tpu.contract_precision<fp32>} : vector<4x248xf32>, vector<248x256xf32>, vector<4x256xf32> -> vector<4x256xf32>
    %c0_26 = arith.constant 0 : index
    %208 = memref.load %arg3[%c0_26] : memref<1xf32, #tpu.memory_space<smem>>
    %209 = vector.broadcast %208 : f32 to vector<4x256xf32>
    %210 = arith.addf %207, %209 : vector<4x256xf32>
    %c0_27 = arith.constant 0 : index
    %c0_28 = arith.constant 0 : index
    %c0_29 = arith.constant 0 : index
    %211 = vector.load %arg6[%c0_27, %c0_28, %c0_29] : memref<1x8x256xf32, #tpu.memory_space<vmem>>, vector<1x4x256xf32>
    %212 = vector.shape_cast %211 : vector<1x4x256xf32> to vector<4x256xf32>
    %213 = vector.shape_cast %210 : vector<4x256xf32> to vector<1x4x256xf32>
    tpu.vector_store %arg6[%c0_27, %c0_28, %c0_29], %213 {strides = array<i32>} : memref<1x8x256xf32, #tpu.memory_space<vmem>>, vector<1x4x256xf32>,
    %c0_30 = arith.constant 0 : index
    %c4 = arith.constant 4 : index
    %c0_31 = arith.constant 0 : index
    %214 = vector.load %arg6[%c0_30, %c4, %c0_31] : memref<1x8x256xf32, #tpu.memory_space<vmem>>, vector<1x4x256xf32>
    tpu.vector_store %arg6[%c0_30, %c4, %c0_31], %0 {strides = array<i32>} : memref<1x8x256xf32, #tpu.memory_space<vmem>>, vector<1x4x256xf32>,
    return
  }
  func.func @transform_0(%arg0: i32) -> (i32, i32, i32) {
    %c0_i32 = arith.constant 0 : i32
    %c0_i32_0 = arith.constant 0 : i32
    %c0_i32_1 = arith.constant 0 : i32
    return %arg0, %c0_i32, %c0_i32_0 : i32, i32, i32
  }
  func.func @transform_1(%arg0: i32) -> (i32, i32) {
    %c0_i32 = arith.constant 0 : i32
    %c0_i32_0 = arith.constant 0 : i32
    %c0_i32_1 = arith.constant 0 : i32
    return %c0_i32, %c0_i32_0 : i32, i32
  }
  func.func @transform_2(%arg0: i32) -> i32 {
    %c0_i32 = arith.constant 0 : i32
    %c0_i32_0 = arith.constant 0 : i32
    return %c0_i32 : i32
  }
  func.func @transform_3(%arg0: i32) -> (i32, i32) {
    %c0_i32 = arith.constant 0 : i32
    %c0_i32_0 = arith.constant 0 : i32
    %c0_i32_1 = arith.constant 0 : i32
    return %c0_i32, %c0_i32_0 : i32, i32
  }
  func.func @transform_4(%arg0: i32) -> (i32, i32) {
    %c0_i32 = arith.constant 0 : i32
    %c0_i32_0 = arith.constant 0 : i32
    %c0_i32_1 = arith.constant 0 : i32
    return %c0_i32, %c0_i32_0 : i32, i32
  }
  func.func @transform_5(%arg0: i32) -> (i32, i32, i32) {
    %c0_i32 = arith.constant 0 : i32
    %c0_i32_0 = arith.constant 0 : i32
    %c0_i32_1 = arith.constant 0 : i32
    return %arg0, %c0_i32, %c0_i32_0 : i32, i32, i32
  }
}

</mosaic_0001>

<llo_original>
// kernel: tpu_custom_call.1
$region0: #{tpu_custom_call.1}
  #allocation0 [shape = 'u32[]', space=smem, size = 0x4, offset = 0x4, fixed_abs, tag = 'smem constant byte address 0x4 - core index']
  #allocation1 [shape = 'u32[144,128]{1,0:T(1,128)}', space=vmem, size = 0x12000, scoped, tag = 'internal scratch']
  #allocation2 [shape = 'f32[1]{0:T(128)S(6)}', space=smem, size = 0x200, scoped, tag = 'scoped memory for tpu_custom_call.1']
  %s0 = inlined_call_operand.hbm [shape: f32[2,4,256], index: 0, kind: input, shape index: {}]
  %s1 = inlined_call_operand.vmem [shape: f32[4,1], index: 1, kind: input, shape index: {}]
  %s2 = inlined_call_operand.<no memory space> [shape: f32[1], index: 2, kind: input, shape index: {}]
  %s3 = inlined_call_operand.vmem [shape: f32[4,248], index: 3, kind: input, shape index: {}]
  %s4 = inlined_call_operand.hbm [shape: f32[248,256], index: 4, kind: input, shape index: {}]
  %s5 = inlined_call_operand.hbm [shape: f32[2,8,256], index: 5, kind: output, shape index: {}]
  %s6 = sld [smem:[#allocation0]]
  $region61: #{tpu_custom_call.1} parent=0
    _
  %s8 = ssub.s32 1, %s6
  %s9 = scalar_select 0, %s8, %s6
  %10 = sst [smem:[#allocation2]] %s2
  $region1: #{tpu_custom_call.1} parent=0
    #allocation3 [shape = 'u8[8192]{0}', space=vmem, size = 0x2000, scoped, tag = 'input window, operand 0']
    #allocation4 [shape = 's32[2]{0}', space=sflag, size = 0x8, scoped, tag = 'scoped memory for tpu_custom_call.1']
    #allocation5 [shape = 's32[2]{0}', space=sflag, size = 0x8, scoped, tag = 'scoped memory for tpu_custom_call.1']
    #allocation6 [shape = 'u8[253952]{0}', space=vmem, size = 0x3e000, scoped, tag = 'input window, operand 4, single buffered']
    #allocation7 [shape = 's32[1]{0}', space=sflag, size = 0x4, scoped, tag = 'scoped memory for tpu_custom_call.1']
    #allocation8 [shape = 'u8[16384]{0}', space=vmem, size = 0x4000, scoped, tag = 'output window, operand 0']
    %11 = vsyncpa [#allocation4], 0
    %s12 = scalar_lea.sflag [#allocation4], 1
    %13 = vsyncpa %s12, 0
    %14 = vsyncpa [#allocation7], 0
    %15 = vsyncpa [#allocation5], 0
    %s16 = scalar_lea.sflag [#allocation5], 1
    %17 = vsyncpa %s16, 0
    loop: start=0, step=1, limit=4
    $region2: #{tpu_custom_call.1} parent=1 // loop_pre_header
      _
    $region3: #{tpu_custom_call.1} parent=1 // loop_header
      %s19 = sphi 0, %s23
      %p20 = scmp.ge.s32.totalorder %s19, 4
      %s29 = sphi 0, %s31
      %s32 = sphi 0, %s29
      %s33 = sphi 0, %s32
      %s49 = sphi 0, %s33
      %s53 = sphi 0, %s53
      %s55 = sphi 0, %s53
      %s56 = sphi 0, %s55
      %s70 = sphi 0, %s56
      %s74 = sphi 0, %s74
      %s76 = sphi 0, %s74
      %s77 = sphi 0, %s76
      %s91 = sphi 0, %s77
      %s95 = sphi 0, %s95
      %s97 = sphi 0, %s95
      %s98 = sphi 0, %s97
      %s112 = sphi 0, %s98
      %s116 = sphi 0, %s116
      %s118 = sphi 0, %s116
      %s119 = sphi 0, %s118
      %s133 = sphi 0, %s119
      %s139 = sphi 0, %s141
      %s142 = sphi 0, %s139
      %s143 = sphi 0, %s142
      %s159 = sphi 0, %s143
    $region4: #{tpu_custom_call.1} parent=1 // loop_header_branch
      %22 = sbr.rel (%p20) target = $region8
    $region5: #{tpu_custom_call.1} parent=1 // loop_body
      %s24 = ssub.s32 %s19, 1
      %s25 = ssub.s32 %s19, 2
      %s26 = sadd.s32 %s19, 1
      %s27 = ssub.s32 %s19, %s26
      %p28 = scmp.eq.s32.totalorder %s27, 0
      %s30 = sadd.s32 %s29, 1
      %s31 = scalar_select %p28, %s29, %s30
      %p34 = pneg %p28
      %p35 = scmp.eq.s32.totalorder %s19, 1
      %p36 = por %p34, %p35
      %p37 = scmp.ne.s32.totalorder %s29, %s32
      %p38 = scmp.eq.s32.totalorder %s19, 0
      %p39 = por %p37, %p38
      %p40 = scmp.ne.s32.totalorder %s29, %s32
      %p41 = scmp.eq.s32.totalorder %s24, 1
      %p42 = por %p40, %p41
      %p43 = scmp.ne.s32.totalorder %s32, %s33
      %p44 = scmp.eq.s32.totalorder %s24, 0
      %p45 = por %p43, %p44
      %p46 = scmp.ne.s32.totalorder %s32, %s33
      %p47 = scmp.eq.s32.totalorder %s25, 1
      %p48 = por %p46, %p47
      %p50 = scmp.ne.s32.totalorder %s33, %s49
      %p51 = scmp.eq.s32.totalorder %s25, 0
      %p52 = por %p50, %p51
      %s54 = sadd.s32 %s53, 1
      %p57 = scmp.eq.s32.totalorder %s19, 1
      %p58 = scmp.ne.s32.totalorder %s53, %s55
      %p59 = scmp.eq.s32.totalorder %s19, 0
      %p60 = por %p58, %p59
      %p61 = scmp.ne.s32.totalorder %s53, %s55
      %p62 = scmp.eq.s32.totalorder %s24, 1
      %p63 = por %p61, %p62
      %p64 = scmp.ne.s32.totalorder %s55, %s56
      %p65 = scmp.eq.s32.totalorder %s24, 0
      %p66 = por %p64, %p65
      %p67 = scmp.ne.s32.totalorder %s55, %s56
      %p68 = scmp.eq.s32.totalorder %s25, 1
      %p69 = por %p67, %p68
      %p71 = scmp.ne.s32.totalorder %s56, %s70
      %p72 = scmp.eq.s32.totalorder %s25, 0
      %p73 = por %p71, %p72
      %s75 = sadd.s32 %s74, 1
      %p78 = scmp.eq.s32.totalorder %s19, 1
      %p79 = scmp.ne.s32.totalorder %s74, %s76
      %p80 = scmp.eq.s32.totalorder %s19, 0
      %p81 = por %p79, %p80
      %p82 = scmp.ne.s32.totalorder %s74, %s76
      %p83 = scmp.eq.s32.totalorder %s24, 1
      %p84 = por %p82, %p83
      %p85 = scmp.ne.s32.totalorder %s76, %s77
      %p86 = scmp.eq.s32.totalorder %s24, 0
      %p87 = por %p85, %p86
      %p88 = scmp.ne.s32.totalorder %s76, %s77
      %p89 = scmp.eq.s32.totalorder %s25, 1
      %p90 = por %p88, %p89
      %p92 = scmp.ne.s32.totalorder %s77, %s91
      %p93 = scmp.eq.s32.totalorder %s25, 0
      %p94 = por %p92, %p93
      %s96 = sadd.s32 %s95, 1
      %p99 = scmp.eq.s32.totalorder %s19, 1
      %p100 = scmp.ne.s32.totalorder %s95, %s97
      %p101 = scmp.eq.s32.totalorder %s19, 0
      %p102 = por %p100, %p101
      %p103 = scmp.ne.s32.totalorder %s95, %s97
      %p104 = scmp.eq.s32.totalorder %s24, 1
      %p105 = por %p103, %p104
      %p106 = scmp.ne.s32.totalorder %s97, %s98
      %p107 = scmp.eq.s32.totalorder %s24, 0
      %p108 = por %p106, %p107
      %p109 = scmp.ne.s32.totalorder %s97, %s98
      %p110 = scmp.eq.s32.totalorder %s25, 1
      %p111 = por %p109, %p110
      %p113 = scmp.ne.s32.totalorder %s98, %s112
      %p114 = scmp.eq.s32.totalorder %s25, 0
      %p115 = por %p113, %p114
      %s117 = sadd.s32 %s116, 1
      %p120 = scmp.eq.s32.totalorder %s19, 1
      %p121 = scmp.ne.s32.totalorder %s116, %s118
      %p122 = scmp.eq.s32.totalorder %s19, 0
      %p123 = por %p121, %p122
      %p124 = scmp.ne.s32.totalorder %s116, %s118
      %p125 = scmp.eq.s32.totalorder %s24, 1
      %p126 = por %p124, %p125
      %p127 = scmp.ne.s32.totalorder %s118, %s119
      %p128 = scmp.eq.s32.totalorder %s24, 0
      %p129 = por %p127, %p128
      %p130 = scmp.ne.s32.totalorder %s118, %s119
      %p131 = scmp.eq.s32.totalorder %s25, 1
      %p132 = por %p130, %p131
      %p134 = scmp.ne.s32.totalorder %s119, %s133
      %p135 = scmp.eq.s32.totalorder %s25, 0
      %p136 = por %p134, %p135
      %s137 = ssub.s32 %s19, %s26
      %p138 = scmp.eq.s32.totalorder %s137, 0
      %s140 = sadd.s32 %s139, 1
      %s141 = scalar_select %p138, %s139, %s140
      %p144 = pneg %p138
      %p145 = scmp.eq.s32.totalorder %s19, 1
      %p146 = por %p144, %p145
      %p147 = scmp.ne.s32.totalorder %s139, %s142
      %p148 = scmp.eq.s32.totalorder %s19, 0
      %p149 = por %p147, %p148
      %p150 = scmp.ne.s32.totalorder %s139, %s142
      %p151 = scmp.eq.s32.totalorder %s24, 1
      %p152 = por %p150, %p151
      %p153 = scmp.ne.s32.totalorder %s142, %s143
      %p154 = scmp.eq.s32.totalorder %s24, 0
      %p155 = por %p153, %p154
      %p156 = scmp.ne.s32.totalorder %s142, %s143
      %p157 = scmp.eq.s32.totalorder %s25, 1
      %p158 = por %p156, %p157
      %p160 = scmp.ne.s32.totalorder %s143, %s159
      %p161 = scmp.eq.s32.totalorder %s25, 0
      %p162 = por %p160, %p161
      %p163 = scmp.le.s32.totalorder 1, %s19
      %p164 = scmp.lt.s32.totalorder %s19, 3
      %p165 = pnand %p163, %p164
      %p166 = pneg %p165
      // Predicated region
      $region9: #{tpu_custom_call.1} parent=5 // pred_check
        _
      $region10: #{tpu_custom_call.1} parent=5 // pred_check_branch
        %168 = sbr.rel (%p165) target = $region12
      $region11: #{tpu_custom_call.1} parent=5 // pred_region
        %s169 = ssub.s32 %s19, 1
        // Predicated region
        $region13: #{tpu_custom_call.1} parent=11 // pred_check
          %p170 = pneg %p66
        $region14: #{tpu_custom_call.1} parent=11 // pred_check_branch
          %172 = sbr.rel (%p170) target = $region16
        $region15: #{tpu_custom_call.1} parent=11 // pred_region
          _
        $region16: #{tpu_custom_call.1} parent=11 // pred_fallthru
          _
        // Predicated region
        $region17: #{tpu_custom_call.1} parent=11 // pred_check
          %p173 = pneg %p87
        $region18: #{tpu_custom_call.1} parent=11 // pred_check_branch
          %175 = sbr.rel (%p173) target = $region20
        $region19: #{tpu_custom_call.1} parent=11 // pred_region
          _
        $region20: #{tpu_custom_call.1} parent=11 // pred_fallthru
          _
        // Predicated region
        $region21: #{tpu_custom_call.1} parent=11 // pred_check
          %p176 = pneg %p108
        $region22: #{tpu_custom_call.1} parent=11 // pred_check_branch
          %178 = sbr.rel (%p176) target = $region24
        $region23: #{tpu_custom_call.1} parent=11 // pred_region
          _
        $region24: #{tpu_custom_call.1} parent=11 // pred_fallthru
          _
        // Predicated region
        $region25: #{tpu_custom_call.1} parent=11 // pred_check
          %p179 = pneg %p129
        $region26: #{tpu_custom_call.1} parent=11 // pred_check_branch
          %181 = sbr.rel (%p179) target = $region28
        $region27: #{tpu_custom_call.1} parent=11 // pred_region
          %s183 = ssub.s32 7936, 7936
          %184 = vsyncadd [#allocation7], %s183
          %s185 = sshll.u32 [#allocation6], 4
          %s186 = int_to_ptr.vmem [resolvable:$true] %s185
          %191 = dma.hbm_to_vmem [thread:$0]  %s4, 7936, %s186, [#allocation7], 256, 256, 16
        $region28: #{tpu_custom_call.1} parent=11 // pred_fallthru
          _
      $region12: #{tpu_custom_call.1} parent=5 // pred_fallthru
        _
      %p192 = scmp.lt.s32.totalorder %s19, 2
      // Predicated region
      $region29: #{tpu_custom_call.1} parent=5 // pred_check
        %p193 = pneg %p192
      $region30: #{tpu_custom_call.1} parent=5 // pred_check_branch
        %195 = sbr.rel (%p193) target = $region32
      $region31: #{tpu_custom_call.1} parent=5 // pred_region
        // Predicated region
        $region33: #{tpu_custom_call.1} parent=31 // pred_check
          %p196 = pneg %p39
        $region34: #{tpu_custom_call.1} parent=31 // pred_check_branch
          %198 = sbr.rel (%p196) target = $region36
        $region35: #{tpu_custom_call.1} parent=31 // pred_region
          %s199 = sand.u32 %s29, 1
          %s200 = scalar_lea.sflag [#allocation4], %s199
          %s201 = sand.u32 %s29, 1
          %s202 = smul.addr %s201, 8
          %s203 = scalar_lea.vmem [#allocation3], %s202
          %s205 = ssub.s32 128, 128
          %206 = vsyncadd %s200, %s205
          %s207 = smul.addr %s19, 2
          %s208 = smul.addr %s207, 64
          %s209 = scalar_lea.hbm %s0, %s208
          %s211 = sshll.u32 %s203, 4
          %s212 = int_to_ptr.vmem [resolvable:$true] %s211
          %214 = dma.hbm_to_vmem [thread:$0]  %s209, 128, %s212, %s200
        $region36: #{tpu_custom_call.1} parent=31 // pred_fallthru
          _
      $region32: #{tpu_custom_call.1} parent=5 // pred_fallthru
        _
      %p215 = scmp.le.s32.totalorder 1, %s19
      %p216 = scmp.lt.s32.totalorder %s19, 3
      %p217 = pnand %p215, %p216
      %p218 = pneg %p217
      // Predicated region
      $region37: #{tpu_custom_call.1} parent=5 // pred_check
        _
      $region38: #{tpu_custom_call.1} parent=5 // pred_check_branch
        %220 = sbr.rel (%p217) target = $region40
      $region39: #{tpu_custom_call.1} parent=5 // pred_region
        %s221 = ssub.s32 %s19, 1
        %s222 = sand.u32 %s32, 1
        %s223 = scalar_lea.sflag [#allocation4], %s222
        %s224 = sand.u32 %s32, 1
        %s225 = smul.addr %s224, 8
        %s226 = scalar_lea.vmem [#allocation3], %s225
        // Predicated region
        $region41: #{tpu_custom_call.1} parent=39 // pred_check
          %p227 = pneg %p45
        $region42: #{tpu_custom_call.1} parent=39 // pred_check_branch
          %229 = sbr.rel (%p227) target = $region44
        $region43: #{tpu_custom_call.1} parent=39 // pred_region
          %230 = dma.done %s223, 128
        $region44: #{tpu_custom_call.1} parent=39 // pred_fallthru
          _
        // Predicated region
        $region45: #{tpu_custom_call.1} parent=39 // pred_check
          %p231 = pneg %p129
        $region46: #{tpu_custom_call.1} parent=39 // pred_check_branch
          %233 = sbr.rel (%p231) target = $region48
        $region47: #{tpu_custom_call.1} parent=39 // pred_region
          %234 = dma.done [#allocation7], 7936
        $region48: #{tpu_custom_call.1} parent=39 // pred_fallthru
          _
        %s235 = sand.u32 %s32, 1
        %s236 = scalar_lea.sflag [#allocation4], %s235
        %s237 = sand.u32 %s32, 1
        %s238 = smul.addr %s237, 8
        %s239 = scalar_lea.vmem [#allocation3], %s238
        %p240 = pneg %p45
        %p241 = pneg %p42
        %p242 = pneg %p66
        %p243 = pneg %p63
        %p244 = pneg %p87
        %p245 = pneg %p84
        %p246 = pneg %p108
        %p247 = pneg %p105
        %p248 = pneg %p129
        %p249 = pneg %p126
        %p250 = pneg %p155
        %p251 = pneg %p152
        %s252 = sand.u32 %s142, 1
        %s253 = scalar_lea.sflag [#allocation5], %s252
        %s254 = sand.u32 %s142, 1
        %s255 = smul.addr %s254, 16
        %s256 = scalar_lea.vmem [#allocation8], %s255
        %v257 = vld [vmem:[%s226] sm:$0xff]
        %v258 = vld [vmem:[%s1] sm:$0xf]
        %260 = vrot.lane.b32.xlu0 %v257, 127
        %v261 = vpop.permute.xlu0 %260
        %v262 = vrot.slane %v261, 4
        %vm263 = vcmask 1039360
        %v264 = vsel %vm263, %v261, %v262
        %v266 = vmax.f32 %v257, %v264
        %268 = vrot.lane.b32.xlu0 %v266, 112
        %v269 = vpop.permute.xlu0 %268
        %v271 = vmax.f32 %v266, %v269
        %273 = vset.pattern.permute.xlu0 0
        %274 = vperm.xlu0 %273, %v258
        %v275 = vpop.permute.xlu0 %274
        %v277 = vmul.f32 %v271, %v275
        %vm278 = vcmask 117760
        %v279 = vsel %vm278, %v277, 0.0
        %v280 = vrot.slane %v279, 4
        %v281 = vadd.f32 %v279, %v280
        %v282 = vrot.slane %v281, 2
        %v283 = vadd.f32 %v281, %v282
        %v284 = vrot.slane %v283, 1
        %v285 = vadd.f32 %v283, %v284
        %vm286 = vcmask 380160
        %v287 = vsel %vm286, %v277, 0.0
        %v288 = vrot.slane %v287, 4
        %v289 = vadd.f32 %v287, %v288
        %v290 = vrot.slane %v289, 2
        %v291 = vadd.f32 %v289, %v290
        %v292 = vrot.slane %v291, 1
        %v293 = vadd.f32 %v291, %v292
        %vm294 = vcmask 642560
        %v295 = vsel %vm294, %v277, 0.0
        %v296 = vrot.slane %v295, 4
        %v297 = vadd.f32 %v295, %v296
        %v298 = vrot.slane %v297, 2
        %v299 = vadd.f32 %v297, %v298
        %v300 = vrot.slane %v299, 1
        %v301 = vadd.f32 %v299, %v300
        %vm302 = vcmask 904960
        %v303 = vsel %vm302, %v277, 0.0
        %v304 = vrot.slane %v303, 4
        %v305 = vadd.f32 %v303, %v304
        %v306 = vrot.slane %v305, 2
        %v307 = vadd.f32 %v305, %v306
        %v308 = vrot.slane %v307, 1
        %v309 = vadd.f32 %v307, %v308
        %v310 = vrot.slane %v266, 4
        %v312 = vrot.slane %v269, 4
        %v314 = vmax.f32 %v310, %v312
        %v315 = vmul.f32 %v314, %v275
        %v316 = vsel %vm278, %v315, 0.0
        %v317 = vrot.slane %v316, 4
        %v318 = vadd.f32 %v316, %v317
        %v319 = vrot.slane %v318, 2
        %v320 = vadd.f32 %v318, %v319
        %v321 = vrot.slane %v320, 1
        %v322 = vadd.f32 %v320, %v321
        %323 = vrot.lane.b32.xlu0 %v266, 96
        %v324 = vpop.permute.xlu0 %323
        %v325 = vrot.slane %v324, 4
        %327 = vrot.lane.b32.xlu0 %v266, 80
        %v328 = vpop.permute.xlu0 %327
        %v329 = vrot.slane %v328, 4
        %v331 = vmax.f32 %v325, %v329
        %v332 = vmul.f32 %v331, %v275
        %v333 = vsel %vm278, %v332, 0.0
        %v334 = vrot.slane %v333, 4
        %v335 = vadd.f32 %v333, %v334
        %v336 = vrot.slane %v335, 2
        %v337 = vadd.f32 %v335, %v336
        %v338 = vrot.slane %v337, 1
        %v339 = vadd.f32 %v337, %v338
        %340 = vrot.lane.b32.xlu0 %v266, 64
        %v341 = vpop.permute.xlu0 %340
        %v342 = vrot.slane %v341, 4
        %344 = vrot.lane.b32.xlu0 %v266, 48
        %v345 = vpop.permute.xlu0 %344
        %v346 = vrot.slane %v345, 4
        %v348 = vmax.f32 %v342, %v346
        %v349 = vmul.f32 %v348, %v275
        %v350 = vsel %vm278, %v349, 0.0
        %v351 = vrot.slane %v350, 4
        %v352 = vadd.f32 %v350, %v351
        %v353 = vrot.slane %v352, 2
        %v354 = vadd.f32 %v352, %v353
        %v355 = vrot.slane %v354, 1
        %v356 = vadd.f32 %v354, %v355
        %357 = vrot.lane.b32.xlu0 %v266, 32
        %v358 = vpop.permute.xlu0 %357
        %v359 = vrot.slane %v358, 4
        %361 = vrot.lane.b32.xlu0 %v266, 16
        %v362 = vpop.permute.xlu0 %361
        %v363 = vrot.slane %v362, 4
        %v365 = vmax.f32 %v359, %v363
        %v366 = vmul.f32 %v365, %v275
        %v367 = vsel %vm278, %v366, 0.0
        %v368 = vrot.slane %v367, 4
        %v369 = vadd.f32 %v367, %v368
        %v370 = vrot.slane %v369, 2
        %v371 = vadd.f32 %v369, %v370
        %v372 = vrot.slane %v371, 1
        %v373 = vadd.f32 %v371, %v372
        %374 = vrot.lane.b32.xlu0 %v257, 126
        %v375 = vpop.permute.xlu0 %374
        %v376 = vrot.slane %v375, 4
        %vm377 = vcmask 1031168
        %v378 = vsel %vm377, %v375, %v376
        %v380 = vmax.f32 %v266, %v378
        %382 = vrot.lane.b32.xlu0 %v380, 112
        %v383 = vpop.permute.xlu0 %382
        %v385 = vmax.f32 %v380, %v383
        %386 = vrot.lane.b32.xlu0 %v380, 96
        %v387 = vpop.permute.xlu0 %386
        %v389 = vmax.f32 %v385, %v387
        %v390 = vmul.f32 %v389, %v275
        %vm391 = vcmask 109568
        %v392 = vsel %vm391, %v390, 0.0
        %v393 = vrot.slane %v392, 4
        %v394 = vadd.f32 %v392, %v393
        %v395 = vrot.slane %v394, 2
        %v396 = vadd.f32 %v394, %v395
        %v397 = vrot.slane %v396, 1
        %v398 = vadd.f32 %v396, %v397
        %vm399 = vcmask 503168
        %v400 = vsel %vm399, %v390, 0.0
        %v401 = vrot.slane %v400, 4
        %v402 = vadd.f32 %v400, %v401
        %v403 = vrot.slane %v402, 2
        %v404 = vadd.f32 %v402, %v403
        %v405 = vrot.slane %v404, 1
        %v406 = vadd.f32 %v404, %v405
        %v407 = vrot.slane %v387, 4
        %vm408 = vcmask 785408
        %v409 = vsel %vm408, %v387, %v407
        %v411 = vmax.f32 %v385, %v409
        %v412 = vmul.f32 %v411, %v275
        %vm413 = vcmask 896768
        %v414 = vsel %vm413, %v412, 0.0
        %v415 = vrot.slane %v414, 4
        %v416 = vadd.f32 %v414, %v415
        %v417 = vrot.slane %v416, 2
        %v418 = vadd.f32 %v416, %v417
        %v419 = vrot.slane %v418, 1
        %v420 = vadd.f32 %v418, %v419
        %v421 = vrot.slane %v383, 4
        %v424 = vmax.f32 %v421, %v407
        %425 = vrot.lane.b32.xlu0 %v380, 80
        %v426 = vpop.permute.xlu0 %425
        %v427 = vrot.slane %v426, 4
        %v429 = vmax.f32 %v424, %v427
        %v430 = vmul.f32 %v429, %v275
        %v431 = vsel %vm391, %v430, 0.0
        %v432 = vrot.slane %v431, 4
        %v433 = vadd.f32 %v431, %v432
        %v434 = vrot.slane %v433, 2
        %v435 = vadd.f32 %v433, %v434
        %v436 = vrot.slane %v435, 1
        %v437 = vadd.f32 %v435, %v436
        %438 = vrot.lane.b32.xlu0 %v380, 64
        %v439 = vpop.permute.xlu0 %438
        %v440 = vrot.slane %v439, 4
        %442 = vrot.lane.b32.xlu0 %v380, 48
        %v443 = vpop.permute.xlu0 %442
        %v444 = vrot.slane %v443, 4
        %v446 = vmax.f32 %v440, %v444
        %447 = vrot.lane.b32.xlu0 %v380, 32
        %v448 = vpop.permute.xlu0 %447
        %v449 = vrot.slane %v448, 4
        %v451 = vmax.f32 %v446, %v449
        %v452 = vmul.f32 %v451, %v275
        %v453 = vsel %vm391, %v452, 0.0
        %v454 = vrot.slane %v453, 4
        %v455 = vadd.f32 %v453, %v454
        %v456 = vrot.slane %v455, 2
        %v457 = vadd.f32 %v455, %v456
        %v458 = vrot.slane %v457, 1
        %v459 = vadd.f32 %v457, %v458
        %460 = vrot.lane.b32.xlu0 %v257, 125
        %v461 = vpop.permute.xlu0 %460
        %v462 = vrot.slane %v461, 4
        %vm463 = vcmask 1022976
        %v464 = vsel %vm463, %v461, %v462
        %v466 = vmax.f32 %v380, %v464
        %467 = vrot.lane.b32.xlu0 %v257, 124
        %v468 = vpop.permute.xlu0 %467
        %v469 = vrot.slane %v468, 4
        %vm470 = vcmask 1014784
        %v471 = vsel %vm470, %v468, %v469
        %v473 = vmax.f32 %v466, %v471
        %475 = vrot.lane.b32.xlu0 %v473, 112
        %v476 = vpop.permute.xlu0 %475
        %v478 = vmax.f32 %v473, %v476
        %479 = vrot.lane.b32.xlu0 %v473, 96
        %v480 = vpop.permute.xlu0 %479
        %v482 = vmax.f32 %v478, %v480
        %483 = vrot.lane.b32.xlu0 %v473, 80
        %v484 = vpop.permute.xlu0 %483
        %v486 = vmax.f32 %v482, %v484
        %487 = vrot.lane.b32.xlu0 %v473, 64
        %v488 = vpop.permute.xlu0 %487
        %v490 = vmax.f32 %v486, %v488
        %v491 = vmul.f32 %v490, %v275
        %vm492 = vcmask 93184
        %v493 = vsel %vm492, %v491, 0.0
        %v494 = vrot.slane %v493, 4
        %v495 = vadd.f32 %v493, %v494
        %v496 = vrot.slane %v495, 2
        %v497 = vadd.f32 %v495, %v496
        %v498 = vrot.slane %v497, 1
        %v499 = vadd.f32 %v497, %v498
        %v500 = vrot.slane %v484, 4
        %vm501 = vcmask 654336
        %v502 = vsel %vm501, %v484, %v500
        %v504 = vmax.f32 %v482, %v502
        %v505 = vrot.slane %v488, 4
        %vm506 = vcmask 523264
        %v507 = vsel %vm506, %v488, %v505
        %v509 = vmax.f32 %v504, %v507
        %v510 = vmul.f32 %v509, %v275
        %vm511 = vcmask 749184
        %v512 = vsel %vm511, %v510, 0.0
        %v513 = vrot.slane %v512, 4
        %v514 = vadd.f32 %v512, %v513
        %v515 = vrot.slane %v514, 2
        %v516 = vadd.f32 %v514, %v515
        %v517 = vrot.slane %v516, 1
        %v518 = vadd.f32 %v516, %v517
        %v519 = vrot.slane %v480, 4
        %v522 = vmax.f32 %v519, %v500
        %v524 = vmax.f32 %v522, %v505
        %525 = vrot.lane.b32.xlu0 %v473, 48
        %v526 = vpop.permute.xlu0 %525
        %v527 = vrot.slane %v526, 4
        %v529 = vmax.f32 %v524, %v527
        %530 = vrot.lane.b32.xlu0 %v473, 32
        %v531 = vpop.permute.xlu0 %530
        %v532 = vrot.slane %v531, 4
        %v534 = vmax.f32 %v529, %v532
        %v535 = vmul.f32 %v534, %v275
        %v536 = vsel %vm492, %v535, 0.0
        %v537 = vrot.slane %v536, 4
        %v538 = vadd.f32 %v536, %v537
        %v539 = vrot.slane %v538, 2
        %v540 = vadd.f32 %v538, %v539
        %v541 = vrot.slane %v540, 1
        %v542 = vadd.f32 %v540, %v541
        %543 = vrot.lane.b32.xlu0 %v257, 123
        %v544 = vpop.permute.xlu0 %543
        %v545 = vrot.slane %v544, 4
        %vm546 = vcmask 1006592
        %v547 = vsel %vm546, %v544, %v545
        %v549 = vmax.f32 %v473, %v547
        %551 = vrot.lane.b32.xlu0 %v549, 112
        %v552 = vpop.permute.xlu0 %551
        %v554 = vmax.f32 %v549, %v552
        %555 = vrot.lane.b32.xlu0 %v549, 96
        %v556 = vpop.permute.xlu0 %555
        %v558 = vmax.f32 %v554, %v556
        %559 = vrot.lane.b32.xlu0 %v549, 80
        %v560 = vpop.permute.xlu0 %559
        %v562 = vmax.f32 %v558, %v560
        %563 = vrot.lane.b32.xlu0 %v549, 64
        %v564 = vpop.permute.xlu0 %563
        %v566 = vmax.f32 %v562, %v564
        %567 = vrot.lane.b32.xlu0 %v549, 48
        %v568 = vpop.permute.xlu0 %567
        %v570 = vmax.f32 %v566, %v568
        %v571 = vmul.f32 %v570, %v275
        %vm572 = vcmask 84992
        %v573 = vsel %vm572, %v571, 0.0
        %v574 = vrot.slane %v573, 4
        %v575 = vadd.f32 %v573, %v574
        %v576 = vrot.slane %v575, 2
        %v577 = vadd.f32 %v575, %v576
        %v578 = vrot.slane %v577, 1
        %v579 = vadd.f32 %v577, %v578
        %v580 = vrot.slane %v556, 4
        %v581 = vsel %vm408, %v556, %v580
        %v583 = vmax.f32 %v554, %v581
        %v584 = vrot.slane %v560, 4
        %v585 = vsel %vm501, %v560, %v584
        %v587 = vmax.f32 %v583, %v585
        %v588 = vrot.slane %v564, 4
        %v589 = vsel %vm506, %v564, %v588
        %v591 = vmax.f32 %v587, %v589
        %v592 = vrot.slane %v568, 4
        %vm593 = vcmask 392192
        %v594 = vsel %vm593, %v568, %v592
        %v596 = vmax.f32 %v591, %v594
        %v597 = vmul.f32 %v596, %v275
        %vm598 = vcmask 872192
        %v599 = vsel %vm598, %v597, 0.0
        %v600 = vrot.slane %v599, 4
        %v601 = vadd.f32 %v599, %v600
        %v602 = vrot.slane %v601, 2
        %v603 = vadd.f32 %v601, %v602
        %v604 = vrot.slane %v603, 1
        %v605 = vadd.f32 %v603, %v604
        %607 = vrot.lane.b32.xlu0 %v293, 111
        %v608 = vpop.permute.xlu0 %607
        %611 = vrot.lane.b32.xlu0 %v301, 94
        %v612 = vpop.permute.xlu0 %611
        %615 = vrot.lane.b32.xlu0 %v309, 77
        %v616 = vpop.permute.xlu0 %615
        %619 = vrot.lane.b32.xlu0 %v322, 60
        %v620 = vpop.permute.xlu0 %619
        %623 = vrot.lane.b32.xlu0 %v339, 75
        %v624 = vpop.permute.xlu0 %623
        %627 = vrot.lane.b32.xlu0 %v356, 90
        %v628 = vpop.permute.xlu0 %627
        %631 = vrot.lane.b32.xlu0 %v373, 105
        %v632 = vpop.permute.xlu0 %631
        %635 = vrot.lane.b32.xlu0 %v398, 120
        %v636 = vpop.permute.xlu0 %635
        %639 = vrot.lane.b32.xlu0 %v406, 86
        %v640 = vpop.permute.xlu0 %639
        %643 = vrot.lane.b32.xlu0 %v420, 52
        %v644 = vpop.permute.xlu0 %643
        %647 = vrot.lane.b32.xlu0 %v437, 34
        %v648 = vpop.permute.xlu0 %647
        %651 = vrot.lane.b32.xlu0 %v459, 48
        %v652 = vpop.permute.xlu0 %651
        %655 = vrot.lane.b32.xlu0 %v499, 62
        %v656 = vpop.permute.xlu0 %655
        %659 = vrot.lane.b32.xlu0 %v518, 122
        %v660 = vpop.permute.xlu0 %659
        %663 = vrot.lane.b32.xlu0 %v542, 86
        %v664 = vpop.permute.xlu0 %663
        %vm666 = vcmask 121856
        %v667 = vsel %vm666, %v285, %v608
        %vm668 = vcmask 244736
        %v669 = vsel %vm668, %v667, %v612
        %vm670 = vcmask 367616
        %v671 = vsel %vm670, %v669, %v616
        %vm672 = vcmask 490496
        %v673 = vsel %vm672, %v671, %v620
        %vm674 = vcmask 613376
        %v675 = vsel %vm674, %v673, %v624
        %vm676 = vcmask 736256
        %v677 = vsel %vm676, %v675, %v628
        %vm678 = vcmask 859136
        %v679 = vsel %vm678, %v677, %v632
        %vm680 = vcmask 982016
        %v681 = vsel %vm680, %v679, %v636
        %vm682 = vcmask 48128
        %v683 = vsel %vm682, %v636, %v640
        %vm684 = vcmask 162816
        %v685 = vsel %vm684, %v683, %v644
        %vm686 = vcmask 277504
        %v687 = vsel %vm686, %v685, %v648
        %v688 = vsel %vm593, %v687, %v652
        %vm689 = vcmask 506880
        %v690 = vsel %vm689, %v688, %v656
        %vm691 = vcmask 605184
        %v692 = vsel %vm691, %v690, %v660
        %vm693 = vcmask 703488
        %v694 = vsel %vm693, %v692, %v664
        %696 = vrot.lane.b32.xlu0 %v605, 43
        %v697 = vpop.permute.xlu0 %696
        %vm699 = vcmask 89088
        %v700 = vsel %vm699, %v579, %v697
        %702 = vrot.lane.b32.xlu0 %v700, 98
        %v703 = vpop.permute.xlu0 %702
        %vm705 = vcmask 801792
        %v706 = vsel %vm705, %v694, %v703
        %v707 = vld [vmem:[%s3] sm:$0xff]
        %v708 = vlaneseq
        %v709 = vshrl.u32 %v708, 7
        %v710 = vsub.s32 0, %v709
        %v711 = vrot.slane %v681, %v710
        %v712 = vlaneseq
        %v713 = vshrl.u32 %v712, 7
        %v714 = vsub.s32 0, %v713
        %v715 = vrot.slane %v706, %v714
        %v718 = vcombine.low %v711, %v715
        %v720 = vmul.f32 %v707, %v718
        %v721 = vld [vmem:[#allocation6] sm:$0xff]
        %v722 = vld [vmem:[#allocation6 + $0x8] sm:$0xff]
        %v723 = vld [vmem:[#allocation6 + $0x10] sm:$0xff]
        %v724 = vld [vmem:[#allocation6 + $0x18] sm:$0xff]
        %v725 = vld [vmem:[#allocation6 + $0x20] sm:$0xff]
        %v726 = vld [vmem:[#allocation6 + $0x28] sm:$0xff]
        %v727 = vld [vmem:[#allocation6 + $0x30] sm:$0xff]
        %v728 = vld [vmem:[#allocation6 + $0x38] sm:$0xff]
        %v729 = vld [vmem:[#allocation6 + $0x40] sm:$0xff]
        %v730 = vld [vmem:[#allocation6 + $0x48] sm:$0xff]
        %v731 = vld [vmem:[#allocation6 + $0x50] sm:$0xff]
        %v732 = vld [vmem:[#allocation6 + $0x58] sm:$0xff]
        %v733 = vld [vmem:[#allocation6 + $0x60] sm:$0xff]
        %v734 = vld [vmem:[#allocation6 + $0x68] sm:$0xff]
        %v735 = vld [vmem:[#allocation6 + $0x70] sm:$0xff]
        %v736 = vld [vmem:[#allocation6 + $0x78] sm:$0xff]
        %v737 = vld [vmem:[#allocation6 + $0x80] sm:$0xff]
        %v738 = vld [vmem:[#allocation6 + $0x88] sm:$0xff]
        %v739 = vld [vmem:[#allocation6 + $0x90] sm:$0xff]
        %v740 = vld [vmem:[#allocation6 + $0x98] sm:$0xff]
        %v741 = vld [vmem:[#allocation6 + $0xa0] sm:$0xff]
        %v742 = vld [vmem:[#allocation6 + $0xa8] sm:$0xff]
        %v743 = vld [vmem:[#allocation6 + $0xb0] sm:$0xff]
        %v744 = vld [vmem:[#allocation6 + $0xb8] sm:$0xff]
        %v745 = vld [vmem:[#allocation6 + $0xc0] sm:$0xff]
        %v746 = vld [vmem:[#allocation6 + $0xc8] sm:$0xff]
        %v747 = vld [vmem:[#allocation6 + $0xd0] sm:$0xff]
        %v748 = vld [vmem:[#allocation6 + $0xd8] sm:$0xff]
        %v749 = vld [vmem:[#allocation6 + $0xe0] sm:$0xff]
        %v750 = vld [vmem:[#allocation6 + $0xe8] sm:$0xff]
        %v751 = vld [vmem:[#allocation6 + $0xf0] sm:$0xff]
        %v752 = vld [vmem:[#allocation6 + $0xf8] sm:$0xff]
        %v753 = vld [vmem:[#allocation6 + $0x100] sm:$0xff]
        %v754 = vld [vmem:[#allocation6 + $0x108] sm:$0xff]
        %v755 = vld [vmem:[#allocation6 + $0x110] sm:$0xff]
        %v756 = vld [vmem:[#allocation6 + $0x118] sm:$0xff]
        %v757 = vld [vmem:[#allocation6 + $0x120] sm:$0xff]
        %v758 = vld [vmem:[#allocation6 + $0x128] sm:$0xff]
        %v759 = vld [vmem:[#allocation6 + $0x130] sm:$0xff]
        %v760 = vld [vmem:[#allocation6 + $0x138] sm:$0xff]
        %v761 = vld [vmem:[#allocation6 + $0x140] sm:$0xff]
        %v762 = vld [vmem:[#allocation6 + $0x148] sm:$0xff]
        %v763 = vld [vmem:[#allocation6 + $0x150] sm:$0xff]
        %v764 = vld [vmem:[#allocation6 + $0x158] sm:$0xff]
        %v765 = vld [vmem:[#allocation6 + $0x160] sm:$0xff]
        %v766 = vld [vmem:[#allocation6 + $0x168] sm:$0xff]
        %v767 = vld [vmem:[#allocation6 + $0x170] sm:$0xff]
        %v768 = vld [vmem:[#allocation6 + $0x178] sm:$0xff]
        %v769 = vld [vmem:[#allocation6 + $0x180] sm:$0xff]
        %v770 = vld [vmem:[#allocation6 + $0x188] sm:$0xff]
        %v771 = vld [vmem:[#allocation6 + $0x190] sm:$0xff]
        %v772 = vld [vmem:[#allocation6 + $0x198] sm:$0xff]
        %v773 = vld [vmem:[#allocation6 + $0x1a0] sm:$0xff]
        %v774 = vld [vmem:[#allocation6 + $0x1a8] sm:$0xff]
        %v775 = vld [vmem:[#allocation6 + $0x1b0] sm:$0xff]
        %v776 = vld [vmem:[#allocation6 + $0x1b8] sm:$0xff]
        %v777 = vld [vmem:[#allocation6 + $0x1c0] sm:$0xff]
        %v778 = vld [vmem:[#allocation6 + $0x1c8] sm:$0xff]
        %v779 = vld [vmem:[#allocation6 + $0x1d0] sm:$0xff]
        %v780 = vld [vmem:[#allocation6 + $0x1d8] sm:$0xff]
        %v781 = vld [vmem:[#allocation6 + $0x1e0] sm:$0xff]
        %v782 = vld [vmem:[#allocation6 + $0x1e8] sm:$0xff]
        %s783 = sld [smem:[#allocation2]]
        %v784 = vstv %s783
        %v786 = vcombine.high %v720, %v720
        %v787 = vsel %vm680, %v786, 0
        %v789 = vand.u32 %v722, 4294901760
        %790 = vmatprep.subr.mxu0 %v789
        %v791 = vand.u32 %v721, 4294901760
        %792 = vmatpush1.msra.mxu0 %v791
        %v793 = vand.u32 %v724, 4294901760
        %794 = vmatprep.subr.mxu0 %v793
        %v795 = vand.u32 %v723, 4294901760
        %796 = vmatpush1.msra.mxu0 %v795
        %v797 = vand.u32 %v726, 4294901760
        %798 = vmatprep.subr.mxu0 %v797
        %v799 = vand.u32 %v725, 4294901760
        %800 = vmatpush1.msra.mxu0 %v799
        %v801 = vand.u32 %v728, 4294901760
        %802 = vmatprep.subr.mxu0 %v801
        %v803 = vand.u32 %v727, 4294901760
        %804 = vmatpush1.msra.mxu0 %v803
        %v805 = vand.u32 %v730, 4294901760
        %806 = vmatprep.subr.mxu0 %v805
        %v807 = vand.u32 %v729, 4294901760
        %808 = vmatpush1.msra.mxu0 %v807
        %v809 = vand.u32 %v732, 4294901760
        %810 = vmatprep.subr.mxu0 %v809
        %v811 = vand.u32 %v731, 4294901760
        %812 = vmatpush1.msra.mxu0 %v811
        %v813 = vand.u32 %v734, 4294901760
        %814 = vmatprep.subr.mxu0 %v813
        %v815 = vand.u32 %v733, 4294901760
        %816 = vmatpush1.msra.mxu0 %v815
        %v817 = vand.u32 %v736, 4294901760
        %818 = vmatprep.subr.mxu0 %v817
        %v819 = vand.u32 %v735, 4294901760
        %820 = vmatpush1.msra.mxu0 %v819
        %v821 = vand.u32 %v738, 4294901760
        %822 = vmatprep.subr.mxu0 %v821
        %v823 = vand.u32 %v737, 4294901760
        %824 = vmatpush1.msra.mxu0 %v823
        %v825 = vand.u32 %v740, 4294901760
        %826 = vmatprep.subr.mxu0 %v825
        %v827 = vand.u32 %v739, 4294901760
        %828 = vmatpush1.msra.mxu0 %v827
        %v829 = vand.u32 %v742, 4294901760
        %830 = vmatprep.subr.mxu0 %v829
        %v831 = vand.u32 %v741, 4294901760
        %832 = vmatpush1.msra.mxu0 %v831
        %v833 = vand.u32 %v744, 4294901760
        %834 = vmatprep.subr.mxu0 %v833
        %v835 = vand.u32 %v743, 4294901760
        %836 = vmatpush1.msra.mxu0 %v835
        %v837 = vand.u32 %v746, 4294901760
        %838 = vmatprep.subr.mxu0 %v837
        %v839 = vand.u32 %v745, 4294901760
        %840 = vmatpush1.msra.mxu0 %v839
        %v841 = vand.u32 %v748, 4294901760
        %842 = vmatprep.subr.mxu0 %v841
        %v843 = vand.u32 %v747, 4294901760
        %844 = vmatpush1.msra.mxu0 %v843
        %v845 = vand.u32 %v750, 4294901760
        %846 = vmatprep.subr.mxu0 %v845
        %v847 = vand.u32 %v749, 4294901760
        %848 = vmatpush1.msra.mxu0 %v847
        %v849 = vand.u32 %v752, 4294901760
        %850 = vmatprep.subr.mxu0 %v849
        %v851 = vand.u32 %v751, 4294901760
        %852 = vmatpush1.msra.mxu0 %v851
        %v853 = vand.u32 %v754, 4294901760
        %854 = vmatprep.subr.mxu0 %v853
        %v855 = vand.u32 %v753, 4294901760
        %856 = vmatpush1.msra.mxu0 %v855
        %v857 = vand.u32 %v756, 4294901760
        %858 = vmatprep.subr.mxu0 %v857
        %v859 = vand.u32 %v755, 4294901760
        %860 = vmatpush1.msra.mxu0 %v859
        %v861 = vand.u32 %v758, 4294901760
        %862 = vmatprep.subr.mxu0 %v861
        %v863 = vand.u32 %v757, 4294901760
        %864 = vmatpush1.msra.mxu0 %v863
        %v865 = vand.u32 %v760, 4294901760
        %866 = vmatprep.subr.mxu0 %v865
        %v867 = vand.u32 %v759, 4294901760
        %868 = vmatpush1.msra.mxu0 %v867
        %v869 = vand.u32 %v762, 4294901760
        %870 = vmatprep.subr.mxu0 %v869
        %v871 = vand.u32 %v761, 4294901760
        %872 = vmatpush1.msra.mxu0 %v871
        %v873 = vand.u32 %v764, 4294901760
        %874 = vmatprep.subr.mxu0 %v873
        %v875 = vand.u32 %v763, 4294901760
        %876 = vmatpush1.msra.mxu0 %v875
        %v877 = vand.u32 %v766, 4294901760
        %878 = vmatprep.subr.mxu0 %v877
        %v879 = vand.u32 %v765, 4294901760
        %880 = vmatpush1.msra.mxu0 %v879
        %v881 = vand.u32 %v768, 4294901760
        %882 = vmatprep.subr.mxu0 %v881
        %v883 = vand.u32 %v767, 4294901760
        %884 = vmatpush1.msra.mxu0 %v883
        %v885 = vand.u32 %v770, 4294901760
        %886 = vmatprep.subr.mxu0 %v885
        %v887 = vand.u32 %v769, 4294901760
        %888 = vmatpush1.msra.mxu0 %v887
        %v889 = vand.u32 %v772, 4294901760
        %890 = vmatprep.subr.mxu0 %v889
        %v891 = vand.u32 %v771, 4294901760
        %892 = vmatpush1.msra.mxu0 %v891
        %v893 = vand.u32 %v774, 4294901760
        %894 = vmatprep.subr.mxu0 %v893
        %v895 = vand.u32 %v773, 4294901760
        %896 = vmatpush1.msra.mxu0 %v895
        %v897 = vand.u32 %v776, 4294901760
        %898 = vmatprep.subr.mxu0 %v897
        %v899 = vand.u32 %v775, 4294901760
        %900 = vmatpush1.msra.mxu0 %v899
        %v901 = vand.u32 %v778, 4294901760
        %902 = vmatprep.subr.mxu0 %v901
        %v903 = vand.u32 %v777, 4294901760
        %904 = vmatpush1.msra.mxu0 %v903
        %v905 = vand.u32 %v780, 4294901760
        %906 = vmatprep.subr.mxu0 %v905
        %v907 = vand.u32 %v779, 4294901760
        %908 = vmatpush1.msra.mxu0 %v907
        %v909 = vand.u32 %v782, 4294901760
        %910 = vmatprep.subr.mxu0 %v909
        %v911 = vand.u32 %v781, 4294901760
        %912 = vmatpush1.msra.mxu0 %v911
        %913 = vmatprep.subr.mxu0 0.0
        %914 = vmatpush1.msra.mxu0 0.0
        %v915 = vand.u32 %v787, 4294901760
        %v916 = vsub.f32 %v787, %v915
        %v917 = vand.u32 %v916, 4294901760
        %v918 = vsub.f32 %v916, %v917
        %v919 = vand.u32 %v918, 4294901760
        %920 = vmatprep.mubr.f32.mxu0 %v919
        %v921 = vand.u32 %v720, 4294901760
        %v922 = vsub.f32 %v720, %v921
        %v923 = vand.u32 %v922, 4294901760
        %v924 = vsub.f32 %v922, %v923
        %v925 = vand.u32 %v924, 4294901760
        %926 = vmatmul.mubr.f32.gmra.mrb[0].mxu0 %v925
        %v927 = vpop.f32.mrb[0].mxu0
        %v928 = vadd.f32 %v784, %v927
        %v929 = vpop.f32.mrb[0].mxu0
        %v930 = vadd.f32 %v784, %v929
        %931 = vdwg.mxu0
        %v932 = vand.u32 %v722, 4294901760
        %v933 = vsub.f32 %v722, %v932
        %v934 = vand.u32 %v933, 4294901760
        %v935 = vsub.f32 %v933, %v934
        %v936 = vand.u32 %v935, 4294901760
        %937 = vmatprep.subr.mxu0 %v936
        %v938 = vand.u32 %v721, 4294901760
        %v939 = vsub.f32 %v721, %v938
        %v940 = vand.u32 %v939, 4294901760
        %v941 = vsub.f32 %v939, %v940
        %v942 = vand.u32 %v941, 4294901760
        %943 = vmatpush1.msra.mxu0 %v942
        %v944 = vand.u32 %v724, 4294901760
        %v945 = vsub.f32 %v724, %v944
        %v946 = vand.u32 %v945, 4294901760
        %v947 = vsub.f32 %v945, %v946
        %v948 = vand.u32 %v947, 4294901760
        %949 = vmatprep.subr.mxu0 %v948
        %v950 = vand.u32 %v723, 4294901760
        %v951 = vsub.f32 %v723, %v950
        %v952 = vand.u32 %v951, 4294901760
        %v953 = vsub.f32 %v951, %v952
        %v954 = vand.u32 %v953, 4294901760
        %955 = vmatpush1.msra.mxu0 %v954
        %v956 = vand.u32 %v726, 4294901760
        %v957 = vsub.f32 %v726, %v956
        %v958 = vand.u32 %v957, 4294901760
        %v959 = vsub.f32 %v957, %v958
        %v960 = vand.u32 %v959, 4294901760
        %961 = vmatprep.subr.mxu0 %v960
        %v962 = vand.u32 %v725, 4294901760
        %v963 = vsub.f32 %v725, %v962
        %v964 = vand.u32 %v963, 4294901760
        %v965 = vsub.f32 %v963, %v964
        %v966 = vand.u32 %v965, 4294901760
        %967 = vmatpush1.msra.mxu0 %v966
        %v968 = vand.u32 %v728, 4294901760
        %v969 = vsub.f32 %v728, %v968
        %v970 = vand.u32 %v969, 4294901760
        %v971 = vsub.f32 %v969, %v970
        %v972 = vand.u32 %v971, 4294901760
        %973 = vmatprep.subr.mxu0 %v972
        %v974 = vand.u32 %v727, 4294901760
        %v975 = vsub.f32 %v727, %v974
        %v976 = vand.u32 %v975, 4294901760
        %v977 = vsub.f32 %v975, %v976
        %v978 = vand.u32 %v977, 4294901760
        %979 = vmatpush1.msra.mxu0 %v978
        %v980 = vand.u32 %v730, 4294901760
        %v981 = vsub.f32 %v730, %v980
        %v982 = vand.u32 %v981, 4294901760
        %v983 = vsub.f32 %v981, %v982
        %v984 = vand.u32 %v983, 4294901760
        %985 = vmatprep.subr.mxu0 %v984
        %v986 = vand.u32 %v729, 4294901760
        %v987 = vsub.f32 %v729, %v986
        %v988 = vand.u32 %v987, 4294901760
        %v989 = vsub.f32 %v987, %v988
        %v990 = vand.u32 %v989, 4294901760
        %991 = vmatpush1.msra.mxu0 %v990
        %v992 = vand.u32 %v732, 4294901760
        %v993 = vsub.f32 %v732, %v992
        %v994 = vand.u32 %v993, 4294901760
        %v995 = vsub.f32 %v993, %v994
        %v996 = vand.u32 %v995, 4294901760
        %997 = vmatprep.subr.mxu0 %v996
        %v998 = vand.u32 %v731, 4294901760
        %v999 = vsub.f32 %v731, %v998
        %v1000 = vand.u32 %v999, 4294901760
        %v1001 = vsub.f32 %v999, %v1000
        %v1002 = vand.u32 %v1001, 4294901760
        %1003 = vmatpush1.msra.mxu0 %v1002
        %v1004 = vand.u32 %v734, 4294901760
        %v1005 = vsub.f32 %v734, %v1004
        %v1006 = vand.u32 %v1005, 4294901760
        %v1007 = vsub.f32 %v1005, %v1006
        %v1008 = vand.u32 %v1007, 4294901760
        %1009 = vmatprep.subr.mxu0 %v1008
        %v1010 = vand.u32 %v733, 4294901760
        %v1011 = vsub.f32 %v733, %v1010
        %v1012 = vand.u32 %v1011, 4294901760
        %v1013 = vsub.f32 %v1011, %v1012
        %v1014 = vand.u32 %v1013, 4294901760
        %1015 = vmatpush1.msra.mxu0 %v1014
        %v1016 = vand.u32 %v736, 4294901760
        %v1017 = vsub.f32 %v736, %v1016
        %v1018 = vand.u32 %v1017, 4294901760
        %v1019 = vsub.f32 %v1017, %v1018
        %v1020 = vand.u32 %v1019, 4294901760
        %1021 = vmatprep.subr.mxu0 %v1020
        %v1022 = vand.u32 %v735, 4294901760
        %v1023 = vsub.f32 %v735, %v1022
        %v1024 = vand.u32 %v1023, 4294901760
        %v1025 = vsub.f32 %v1023, %v1024
        %v1026 = vand.u32 %v1025, 4294901760
        %1027 = vmatpush1.msra.mxu0 %v1026
        %v1028 = vand.u32 %v738, 4294901760
        %v1029 = vsub.f32 %v738, %v1028
        %v1030 = vand.u32 %v1029, 4294901760
        %v1031 = vsub.f32 %v1029, %v1030
        %v1032 = vand.u32 %v1031, 4294901760
        %1033 = vmatprep.subr.mxu0 %v1032
        %v1034 = vand.u32 %v737, 4294901760
        %v1035 = vsub.f32 %v737, %v1034
        %v1036 = vand.u32 %v1035, 4294901760
        %v1037 = vsub.f32 %v1035, %v1036
        %v1038 = vand.u32 %v1037, 4294901760
        %1039 = vmatpush1.msra.mxu0 %v1038
        %v1040 = vand.u32 %v740, 4294901760
        %v1041 = vsub.f32 %v740, %v1040
        %v1042 = vand.u32 %v1041, 4294901760
        %v1043 = vsub.f32 %v1041, %v1042
        %v1044 = vand.u32 %v1043, 4294901760
        %1045 = vmatprep.subr.mxu0 %v1044
        %v1046 = vand.u32 %v739, 4294901760
        %v1047 = vsub.f32 %v739, %v1046
        %v1048 = vand.u32 %v1047, 4294901760
        %v1049 = vsub.f32 %v1047, %v1048
        %v1050 = vand.u32 %v1049, 4294901760
        %1051 = vmatpush1.msra.mxu0 %v1050
        %v1052 = vand.u32 %v742, 4294901760
        %v1053 = vsub.f32 %v742, %v1052
        %v1054 = vand.u32 %v1053, 4294901760
        %v1055 = vsub.f32 %v1053, %v1054
        %v1056 = vand.u32 %v1055, 4294901760
        %1057 = vmatprep.subr.mxu0 %v1056
        %v1058 = vand.u32 %v741, 4294901760
        %v1059 = vsub.f32 %v741, %v1058
        %v1060 = vand.u32 %v1059, 4294901760
        %v1061 = vsub.f32 %v1059, %v1060
        %v1062 = vand.u32 %v1061, 4294901760
        %1063 = vmatpush1.msra.mxu0 %v1062
        %v1064 = vand.u32 %v744, 4294901760
        %v1065 = vsub.f32 %v744, %v1064
        %v1066 = vand.u32 %v1065, 4294901760
        %v1067 = vsub.f32 %v1065, %v1066
        %v1068 = vand.u32 %v1067, 4294901760
        %1069 = vmatprep.subr.mxu0 %v1068
        %v1070 = vand.u32 %v743, 4294901760
        %v1071 = vsub.f32 %v743, %v1070
        %v1072 = vand.u32 %v1071, 4294901760
        %v1073 = vsub.f32 %v1071, %v1072
        %v1074 = vand.u32 %v1073, 4294901760
        %1075 = vmatpush1.msra.mxu0 %v1074
        %v1076 = vand.u32 %v746, 4294901760
        %v1077 = vsub.f32 %v746, %v1076
        %v1078 = vand.u32 %v1077, 4294901760
        %v1079 = vsub.f32 %v1077, %v1078
        %v1080 = vand.u32 %v1079, 4294901760
        %1081 = vmatprep.subr.mxu0 %v1080
        %v1082 = vand.u32 %v745, 4294901760
        %v1083 = vsub.f32 %v745, %v1082
        %v1084 = vand.u32 %v1083, 4294901760
        %v1085 = vsub.f32 %v1083, %v1084
        %v1086 = vand.u32 %v1085, 4294901760
        %1087 = vmatpush1.msra.mxu0 %v1086
        %v1088 = vand.u32 %v748, 4294901760
        %v1089 = vsub.f32 %v748, %v1088
        %v1090 = vand.u32 %v1089, 4294901760
        %v1091 = vsub.f32 %v1089, %v1090
        %v1092 = vand.u32 %v1091, 4294901760
        %1093 = vmatprep.subr.mxu0 %v1092
        %v1094 = vand.u32 %v747, 4294901760
        %v1095 = vsub.f32 %v747, %v1094
        %v1096 = vand.u32 %v1095, 4294901760
        %v1097 = vsub.f32 %v1095, %v1096
        %v1098 = vand.u32 %v1097, 4294901760
        %1099 = vmatpush1.msra.mxu0 %v1098
        %v1100 = vand.u32 %v750, 4294901760
        %v1101 = vsub.f32 %v750, %v1100
        %v1102 = vand.u32 %v1101, 4294901760
        %v1103 = vsub.f32 %v1101, %v1102
        %v1104 = vand.u32 %v1103, 4294901760
        %1105 = vmatprep.subr.mxu0 %v1104
        %v1106 = vand.u32 %v749, 4294901760
        %v1107 = vsub.f32 %v749, %v1106
        %v1108 = vand.u32 %v1107, 4294901760
        %v1109 = vsub.f32 %v1107, %v1108
        %v1110 = vand.u32 %v1109, 4294901760
        %1111 = vmatpush1.msra.mxu0 %v1110
        %v1112 = vand.u32 %v752, 4294901760
        %v1113 = vsub.f32 %v752, %v1112
        %v1114 = vand.u32 %v1113, 4294901760
        %v1115 = vsub.f32 %v1113, %v1114
        %v1116 = vand.u32 %v1115, 4294901760
        %1117 = vmatprep.subr.mxu0 %v1116
        %v1118 = vand.u32 %v751, 4294901760
        %v1119 = vsub.f32 %v751, %v1118
        %v1120 = vand.u32 %v1119, 4294901760
        %v1121 = vsub.f32 %v1119, %v1120
        %v1122 = vand.u32 %v1121, 4294901760
        %1123 = vmatpush1.msra.mxu0 %v1122
        %v1124 = vand.u32 %v754, 4294901760
        %v1125 = vsub.f32 %v754, %v1124
        %v1126 = vand.u32 %v1125, 4294901760
        %v1127 = vsub.f32 %v1125, %v1126
        %v1128 = vand.u32 %v1127, 4294901760
        %1129 = vmatprep.subr.mxu0 %v1128
        %v1130 = vand.u32 %v753, 4294901760
        %v1131 = vsub.f32 %v753, %v1130
        %v1132 = vand.u32 %v1131, 4294901760
        %v1133 = vsub.f32 %v1131, %v1132
        %v1134 = vand.u32 %v1133, 4294901760
        %1135 = vmatpush1.msra.mxu0 %v1134
        %v1136 = vand.u32 %v756, 4294901760
        %v1137 = vsub.f32 %v756, %v1136
        %v1138 = vand.u32 %v1137, 4294901760
        %v1139 = vsub.f32 %v1137, %v1138
        %v1140 = vand.u32 %v1139, 4294901760
        %1141 = vmatprep.subr.mxu0 %v1140
        %v1142 = vand.u32 %v755, 4294901760
        %v1143 = vsub.f32 %v755, %v1142
        %v1144 = vand.u32 %v1143, 4294901760
        %v1145 = vsub.f32 %v1143, %v1144
        %v1146 = vand.u32 %v1145, 4294901760
        %1147 = vmatpush1.msra.mxu0 %v1146
        %v1148 = vand.u32 %v758, 4294901760
        %v1149 = vsub.f32 %v758, %v1148
        %v1150 = vand.u32 %v1149, 4294901760
        %v1151 = vsub.f32 %v1149, %v1150
        %v1152 = vand.u32 %v1151, 4294901760
        %1153 = vmatprep.subr.mxu0 %v1152
        %v1154 = vand.u32 %v757, 4294901760
        %v1155 = vsub.f32 %v757, %v1154
        %v1156 = vand.u32 %v1155, 4294901760
        %v1157 = vsub.f32 %v1155, %v1156
        %v1158 = vand.u32 %v1157, 4294901760
        %1159 = vmatpush1.msra.mxu0 %v1158
        %v1160 = vand.u32 %v760, 4294901760
        %v1161 = vsub.f32 %v760, %v1160
        %v1162 = vand.u32 %v1161, 4294901760
        %v1163 = vsub.f32 %v1161, %v1162
        %v1164 = vand.u32 %v1163, 4294901760
        %1165 = vmatprep.subr.mxu0 %v1164
        %v1166 = vand.u32 %v759, 4294901760
        %v1167 = vsub.f32 %v759, %v1166
        %v1168 = vand.u32 %v1167, 4294901760
        %v1169 = vsub.f32 %v1167, %v1168
        %v1170 = vand.u32 %v1169, 4294901760
        %1171 = vmatpush1.msra.mxu0 %v1170
        %v1172 = vand.u32 %v762, 4294901760
        %v1173 = vsub.f32 %v762, %v1172
        %v1174 = vand.u32 %v1173, 4294901760
        %v1175 = vsub.f32 %v1173, %v1174
        %v1176 = vand.u32 %v1175, 4294901760
        %1177 = vmatprep.subr.mxu0 %v1176
        %v1178 = vand.u32 %v761, 4294901760
        %v1179 = vsub.f32 %v761, %v1178
        %v1180 = vand.u32 %v1179, 4294901760
        %v1181 = vsub.f32 %v1179, %v1180
        %v1182 = vand.u32 %v1181, 4294901760
        %1183 = vmatpush1.msra.mxu0 %v1182
        %v1184 = vand.u32 %v764, 4294901760
        %v1185 = vsub.f32 %v764, %v1184
        %v1186 = vand.u32 %v1185, 4294901760
        %v1187 = vsub.f32 %v1185, %v1186
        %v1188 = vand.u32 %v1187, 4294901760
        %1189 = vmatprep.subr.mxu0 %v1188
        %v1190 = vand.u32 %v763, 4294901760
        %v1191 = vsub.f32 %v763, %v1190
        %v1192 = vand.u32 %v1191, 4294901760
        %v1193 = vsub.f32 %v1191, %v1192
        %v1194 = vand.u32 %v1193, 4294901760
        %1195 = vmatpush1.msra.mxu0 %v1194
        %v1196 = vand.u32 %v766, 4294901760
        %v1197 = vsub.f32 %v766, %v1196
        %v1198 = vand.u32 %v1197, 4294901760
        %v1199 = vsub.f32 %v1197, %v1198
        %v1200 = vand.u32 %v1199, 4294901760
        %1201 = vmatprep.subr.mxu0 %v1200
        %v1202 = vand.u32 %v765, 4294901760
        %v1203 = vsub.f32 %v765, %v1202
        %v1204 = vand.u32 %v1203, 4294901760
        %v1205 = vsub.f32 %v1203, %v1204
        %v1206 = vand.u32 %v1205, 4294901760
        %1207 = vmatpush1.msra.mxu0 %v1206
        %v1208 = vand.u32 %v768, 4294901760
        %v1209 = vsub.f32 %v768, %v1208
        %v1210 = vand.u32 %v1209, 4294901760
        %v1211 = vsub.f32 %v1209, %v1210
        %v1212 = vand.u32 %v1211, 4294901760
        %1213 = vmatprep.subr.mxu0 %v1212
        %v1214 = vand.u32 %v767, 4294901760
        %v1215 = vsub.f32 %v767, %v1214
        %v1216 = vand.u32 %v1215, 4294901760
        %v1217 = vsub.f32 %v1215, %v1216
        %v1218 = vand.u32 %v1217, 4294901760
        %1219 = vmatpush1.msra.mxu0 %v1218
        %v1220 = vand.u32 %v770, 4294901760
        %v1221 = vsub.f32 %v770, %v1220
        %v1222 = vand.u32 %v1221, 4294901760
        %v1223 = vsub.f32 %v1221, %v1222
        %v1224 = vand.u32 %v1223, 4294901760
        %1225 = vmatprep.subr.mxu0 %v1224
        %v1226 = vand.u32 %v769, 4294901760
        %v1227 = vsub.f32 %v769, %v1226
        %v1228 = vand.u32 %v1227, 4294901760
        %v1229 = vsub.f32 %v1227, %v1228
        %v1230 = vand.u32 %v1229, 4294901760
        %1231 = vmatpush1.msra.mxu0 %v1230
        %v1232 = vand.u32 %v772, 4294901760
        %v1233 = vsub.f32 %v772, %v1232
        %v1234 = vand.u32 %v1233, 4294901760
        %v1235 = vsub.f32 %v1233, %v1234
        %v1236 = vand.u32 %v1235, 4294901760
        %1237 = vmatprep.subr.mxu0 %v1236
        %v1238 = vand.u32 %v771, 4294901760
        %v1239 = vsub.f32 %v771, %v1238
        %v1240 = vand.u32 %v1239, 4294901760
        %v1241 = vsub.f32 %v1239, %v1240
        %v1242 = vand.u32 %v1241, 4294901760
        %1243 = vmatpush1.msra.mxu0 %v1242
        %v1244 = vand.u32 %v774, 4294901760
        %v1245 = vsub.f32 %v774, %v1244
        %v1246 = vand.u32 %v1245, 4294901760
        %v1247 = vsub.f32 %v1245, %v1246
        %v1248 = vand.u32 %v1247, 4294901760
        %1249 = vmatprep.subr.mxu0 %v1248
        %v1250 = vand.u32 %v773, 4294901760
        %v1251 = vsub.f32 %v773, %v1250
        %v1252 = vand.u32 %v1251, 4294901760
        %v1253 = vsub.f32 %v1251, %v1252
        %v1254 = vand.u32 %v1253, 4294901760
        %1255 = vmatpush1.msra.mxu0 %v1254
        %v1256 = vand.u32 %v776, 4294901760
        %v1257 = vsub.f32 %v776, %v1256
        %v1258 = vand.u32 %v1257, 4294901760
        %v1259 = vsub.f32 %v1257, %v1258
        %v1260 = vand.u32 %v1259, 4294901760
        %1261 = vmatprep.subr.mxu0 %v1260
        %v1262 = vand.u32 %v775, 4294901760
        %v1263 = vsub.f32 %v775, %v1262
        %v1264 = vand.u32 %v1263, 4294901760
        %v1265 = vsub.f32 %v1263, %v1264
        %v1266 = vand.u32 %v1265, 4294901760
        %1267 = vmatpush1.msra.mxu0 %v1266
        %v1268 = vand.u32 %v778, 4294901760
        %v1269 = vsub.f32 %v778, %v1268
        %v1270 = vand.u32 %v1269, 4294901760
        %v1271 = vsub.f32 %v1269, %v1270
        %v1272 = vand.u32 %v1271, 4294901760
        %1273 = vmatprep.subr.mxu0 %v1272
        %v1274 = vand.u32 %v777, 4294901760
        %v1275 = vsub.f32 %v777, %v1274
        %v1276 = vand.u32 %v1275, 4294901760
        %v1277 = vsub.f32 %v1275, %v1276
        %v1278 = vand.u32 %v1277, 4294901760
        %1279 = vmatpush1.msra.mxu0 %v1278
        %v1280 = vand.u32 %v780, 4294901760
        %v1281 = vsub.f32 %v780, %v1280
        %v1282 = vand.u32 %v1281, 4294901760
        %v1283 = vsub.f32 %v1281, %v1282
        %v1284 = vand.u32 %v1283, 4294901760
        %1285 = vmatprep.subr.mxu0 %v1284
        %v1286 = vand.u32 %v779, 4294901760
        %v1287 = vsub.f32 %v779, %v1286
        %v1288 = vand.u32 %v1287, 4294901760
        %v1289 = vsub.f32 %v1287, %v1288
        %v1290 = vand.u32 %v1289, 4294901760
        %1291 = vmatpush1.msra.mxu0 %v1290
        %v1292 = vand.u32 %v782, 4294901760
        %v1293 = vsub.f32 %v782, %v1292
        %v1294 = vand.u32 %v1293, 4294901760
        %v1295 = vsub.f32 %v1293, %v1294
        %v1296 = vand.u32 %v1295, 4294901760
        %1297 = vmatprep.subr.mxu0 %v1296
        %v1298 = vand.u32 %v781, 4294901760
        %v1299 = vsub.f32 %v781, %v1298
        %v1300 = vand.u32 %v1299, 4294901760
        %v1301 = vsub.f32 %v1299, %v1300
        %v1302 = vand.u32 %v1301, 4294901760
        %1303 = vmatpush1.msra.mxu0 %v1302
        %1304 = vmatprep.subr.mxu0 0.0
        %1305 = vmatpush1.msra.mxu0 0.0
        %v1306 = vand.u32 %v787, 4294901760
        %1307 = vmatprep.mubr.f32.mxu0 %v1306
        %v1308 = vand.u32 %v720, 4294901760
        %1309 = vmatmul.mubr.f32.gmra.mrb[0].mxu0 %v1308
        %v1310 = vpop.f32.mrb[0].mxu0
        %v1311 = vadd.f32 %v928, %v1310
        %v1312 = vpop.f32.mrb[0].mxu0
        %v1313 = vadd.f32 %v930, %v1312
        %1314 = vdwg.mxu0
        %v1315 = vand.u32 %v722, 4294901760
        %v1316 = vsub.f32 %v722, %v1315
        %1317 = vmatprep.subr.mxu0 %v1316
        %v1318 = vand.u32 %v721, 4294901760
        %v1319 = vsub.f32 %v721, %v1318
        %1320 = vmatpush1.msra.mxu0 %v1319
        %v1321 = vand.u32 %v724, 4294901760
        %v1322 = vsub.f32 %v724, %v1321
        %1323 = vmatprep.subr.mxu0 %v1322
        %v1324 = vand.u32 %v723, 4294901760
        %v1325 = vsub.f32 %v723, %v1324
        %1326 = vmatpush1.msra.mxu0 %v1325
        %v1327 = vand.u32 %v726, 4294901760
        %v1328 = vsub.f32 %v726, %v1327
        %1329 = vmatprep.subr.mxu0 %v1328
        %v1330 = vand.u32 %v725, 4294901760
        %v1331 = vsub.f32 %v725, %v1330
        %1332 = vmatpush1.msra.mxu0 %v1331
        %v1333 = vand.u32 %v728, 4294901760
        %v1334 = vsub.f32 %v728, %v1333
        %1335 = vmatprep.subr.mxu0 %v1334
        %v1336 = vand.u32 %v727, 4294901760
        %v1337 = vsub.f32 %v727, %v1336
        %1338 = vmatpush1.msra.mxu0 %v1337
        %v1339 = vand.u32 %v730, 4294901760
        %v1340 = vsub.f32 %v730, %v1339
        %1341 = vmatprep.subr.mxu0 %v1340
        %v1342 = vand.u32 %v729, 4294901760
        %v1343 = vsub.f32 %v729, %v1342
        %1344 = vmatpush1.msra.mxu0 %v1343
        %v1345 = vand.u32 %v732, 4294901760
        %v1346 = vsub.f32 %v732, %v1345
        %1347 = vmatprep.subr.mxu0 %v1346
        %v1348 = vand.u32 %v731, 4294901760
        %v1349 = vsub.f32 %v731, %v1348
        %1350 = vmatpush1.msra.mxu0 %v1349
        %v1351 = vand.u32 %v734, 4294901760
        %v1352 = vsub.f32 %v734, %v1351
        %1353 = vmatprep.subr.mxu0 %v1352
        %v1354 = vand.u32 %v733, 4294901760
        %v1355 = vsub.f32 %v733, %v1354
        %1356 = vmatpush1.msra.mxu0 %v1355
        %v1357 = vand.u32 %v736, 4294901760
        %v1358 = vsub.f32 %v736, %v1357
        %1359 = vmatprep.subr.mxu0 %v1358
        %v1360 = vand.u32 %v735, 4294901760
        %v1361 = vsub.f32 %v735, %v1360
        %1362 = vmatpush1.msra.mxu0 %v1361
        %v1363 = vand.u32 %v738, 4294901760
        %v1364 = vsub.f32 %v738, %v1363
        %1365 = vmatprep.subr.mxu0 %v1364
        %v1366 = vand.u32 %v737, 4294901760
        %v1367 = vsub.f32 %v737, %v1366
        %1368 = vmatpush1.msra.mxu0 %v1367
        %v1369 = vand.u32 %v740, 4294901760
        %v1370 = vsub.f32 %v740, %v1369
        %1371 = vmatprep.subr.mxu0 %v1370
        %v1372 = vand.u32 %v739, 4294901760
        %v1373 = vsub.f32 %v739, %v1372
        %1374 = vmatpush1.msra.mxu0 %v1373
        %v1375 = vand.u32 %v742, 4294901760
        %v1376 = vsub.f32 %v742, %v1375
        %1377 = vmatprep.subr.mxu0 %v1376
        %v1378 = vand.u32 %v741, 4294901760
        %v1379 = vsub.f32 %v741, %v1378
        %1380 = vmatpush1.msra.mxu0 %v1379
        %v1381 = vand.u32 %v744, 4294901760
        %v1382 = vsub.f32 %v744, %v1381
        %1383 = vmatprep.subr.mxu0 %v1382
        %v1384 = vand.u32 %v743, 4294901760
        %v1385 = vsub.f32 %v743, %v1384
        %1386 = vmatpush1.msra.mxu0 %v1385
        %v1387 = vand.u32 %v746, 4294901760
        %v1388 = vsub.f32 %v746, %v1387
        %1389 = vmatprep.subr.mxu0 %v1388
        %v1390 = vand.u32 %v745, 4294901760
        %v1391 = vsub.f32 %v745, %v1390
        %1392 = vmatpush1.msra.mxu0 %v1391
        %v1393 = vand.u32 %v748, 4294901760
        %v1394 = vsub.f32 %v748, %v1393
        %1395 = vmatprep.subr.mxu0 %v1394
        %v1396 = vand.u32 %v747, 4294901760
        %v1397 = vsub.f32 %v747, %v1396
        %1398 = vmatpush1.msra.mxu0 %v1397
        %v1399 = vand.u32 %v750, 4294901760
        %v1400 = vsub.f32 %v750, %v1399
        %1401 = vmatprep.subr.mxu0 %v1400
        %v1402 = vand.u32 %v749, 4294901760
        %v1403 = vsub.f32 %v749, %v1402
        %1404 = vmatpush1.msra.mxu0 %v1403
        %v1405 = vand.u32 %v752, 4294901760
        %v1406 = vsub.f32 %v752, %v1405
        %1407 = vmatprep.subr.mxu0 %v1406
        %v1408 = vand.u32 %v751, 4294901760
        %v1409 = vsub.f32 %v751, %v1408
        %1410 = vmatpush1.msra.mxu0 %v1409
        %v1411 = vand.u32 %v754, 4294901760
        %v1412 = vsub.f32 %v754, %v1411
        %1413 = vmatprep.subr.mxu0 %v1412
        %v1414 = vand.u32 %v753, 4294901760
        %v1415 = vsub.f32 %v753, %v1414
        %1416 = vmatpush1.msra.mxu0 %v1415
        %v1417 = vand.u32 %v756, 4294901760
        %v1418 = vsub.f32 %v756, %v1417
        %1419 = vmatprep.subr.mxu0 %v1418
        %v1420 = vand.u32 %v755, 4294901760
        %v1421 = vsub.f32 %v755, %v1420
        %1422 = vmatpush1.msra.mxu0 %v1421
        %v1423 = vand.u32 %v758, 4294901760
        %v1424 = vsub.f32 %v758, %v1423
        %1425 = vmatprep.subr.mxu0 %v1424
        %v1426 = vand.u32 %v757, 4294901760
        %v1427 = vsub.f32 %v757, %v1426
        %1428 = vmatpush1.msra.mxu0 %v1427
        %v1429 = vand.u32 %v760, 4294901760
        %v1430 = vsub.f32 %v760, %v1429
        %1431 = vmatprep.subr.mxu0 %v1430
        %v1432 = vand.u32 %v759, 4294901760
        %v1433 = vsub.f32 %v759, %v1432
        %1434 = vmatpush1.msra.mxu0 %v1433
        %v1435 = vand.u32 %v762, 4294901760
        %v1436 = vsub.f32 %v762, %v1435
        %1437 = vmatprep.subr.mxu0 %v1436
        %v1438 = vand.u32 %v761, 4294901760
        %v1439 = vsub.f32 %v761, %v1438
        %1440 = vmatpush1.msra.mxu0 %v1439
        %v1441 = vand.u32 %v764, 4294901760
        %v1442 = vsub.f32 %v764, %v1441
        %1443 = vmatprep.subr.mxu0 %v1442
        %v1444 = vand.u32 %v763, 4294901760
        %v1445 = vsub.f32 %v763, %v1444
        %1446 = vmatpush1.msra.mxu0 %v1445
        %v1447 = vand.u32 %v766, 4294901760
        %v1448 = vsub.f32 %v766, %v1447
        %1449 = vmatprep.subr.mxu0 %v1448
        %v1450 = vand.u32 %v765, 4294901760
        %v1451 = vsub.f32 %v765, %v1450
        %1452 = vmatpush1.msra.mxu0 %v1451
        %v1453 = vand.u32 %v768, 4294901760
        %v1454 = vsub.f32 %v768, %v1453
        %1455 = vmatprep.subr.mxu0 %v1454
        %v1456 = vand.u32 %v767, 4294901760
        %v1457 = vsub.f32 %v767, %v1456
        %1458 = vmatpush1.msra.mxu0 %v1457
        %v1459 = vand.u32 %v770, 4294901760
        %v1460 = vsub.f32 %v770, %v1459
        %1461 = vmatprep.subr.mxu0 %v1460
        %v1462 = vand.u32 %v769, 4294901760
        %v1463 = vsub.f32 %v769, %v1462
        %1464 = vmatpush1.msra.mxu0 %v1463
        %v1465 = vand.u32 %v772, 4294901760
        %v1466 = vsub.f32 %v772, %v1465
        %1467 = vmatprep.subr.mxu0 %v1466
        %v1468 = vand.u32 %v771, 4294901760
        %v1469 = vsub.f32 %v771, %v1468
        %1470 = vmatpush1.msra.mxu0 %v1469
        %v1471 = vand.u32 %v774, 4294901760
        %v1472 = vsub.f32 %v774, %v1471
        %1473 = vmatprep.subr.mxu0 %v1472
        %v1474 = vand.u32 %v773, 4294901760
        %v1475 = vsub.f32 %v773, %v1474
        %1476 = vmatpush1.msra.mxu0 %v1475
        %v1477 = vand.u32 %v776, 4294901760
        %v1478 = vsub.f32 %v776, %v1477
        %1479 = vmatprep.subr.mxu0 %v1478
        %v1480 = vand.u32 %v775, 4294901760
        %v1481 = vsub.f32 %v775, %v1480
        %1482 = vmatpush1.msra.mxu0 %v1481
        %v1483 = vand.u32 %v778, 4294901760
        %v1484 = vsub.f32 %v778, %v1483
        %1485 = vmatprep.subr.mxu0 %v1484
        %v1486 = vand.u32 %v777, 4294901760
        %v1487 = vsub.f32 %v777, %v1486
        %1488 = vmatpush1.msra.mxu0 %v1487
        %v1489 = vand.u32 %v780, 4294901760
        %v1490 = vsub.f32 %v780, %v1489
        %1491 = vmatprep.subr.mxu0 %v1490
        %v1492 = vand.u32 %v779, 4294901760
        %v1493 = vsub.f32 %v779, %v1492
        %1494 = vmatpush1.msra.mxu0 %v1493
        %v1495 = vand.u32 %v782, 4294901760
        %v1496 = vsub.f32 %v782, %v1495
        %1497 = vmatprep.subr.mxu0 %v1496
        %v1498 = vand.u32 %v781, 4294901760
        %v1499 = vsub.f32 %v781, %v1498
        %1500 = vmatpush1.msra.mxu0 %v1499
        %1501 = vmatprep.subr.mxu0 0.0
        %1502 = vmatpush1.msra.mxu0 0.0
        %v1503 = vand.u32 %v787, 4294901760
        %v1504 = vsub.f32 %v787, %v1503
        %1505 = vmatprep.mubr.f32.mxu0 %v1504
        %v1506 = vand.u32 %v720, 4294901760
        %v1507 = vsub.f32 %v720, %v1506
        %1508 = vmatmul.mubr.f32.gmra.mrb[0].mxu0 %v1507
        %v1509 = vpop.f32.mrb[0].mxu0
        %v1510 = vadd.f32 %v1311, %v1509
        %v1511 = vpop.f32.mrb[0].mxu0
        %v1512 = vadd.f32 %v1313, %v1511
        %1513 = vdwg.mxu0
        %v1514 = vand.u32 %v722, 4294901760
        %1515 = vmatprep.subr.mxu0 %v1514
        %v1516 = vand.u32 %v721, 4294901760
        %1517 = vmatpush1.msra.mxu0 %v1516
        %v1518 = vand.u32 %v724, 4294901760
        %1519 = vmatprep.subr.mxu0 %v1518
        %v1520 = vand.u32 %v723, 4294901760
        %1521 = vmatpush1.msra.mxu0 %v1520
        %v1522 = vand.u32 %v726, 4294901760
        %1523 = vmatprep.subr.mxu0 %v1522
        %v1524 = vand.u32 %v725, 4294901760
        %1525 = vmatpush1.msra.mxu0 %v1524
        %v1526 = vand.u32 %v728, 4294901760
        %1527 = vmatprep.subr.mxu0 %v1526
        %v1528 = vand.u32 %v727, 4294901760
        %1529 = vmatpush1.msra.mxu0 %v1528
        %v1530 = vand.u32 %v730, 4294901760
        %1531 = vmatprep.subr.mxu0 %v1530
        %v1532 = vand.u32 %v729, 4294901760
        %1533 = vmatpush1.msra.mxu0 %v1532
        %v1534 = vand.u32 %v732, 4294901760
        %1535 = vmatprep.subr.mxu0 %v1534
        %v1536 = vand.u32 %v731, 4294901760
        %1537 = vmatpush1.msra.mxu0 %v1536
        %v1538 = vand.u32 %v734, 4294901760
        %1539 = vmatprep.subr.mxu0 %v1538
        %v1540 = vand.u32 %v733, 4294901760
        %1541 = vmatpush1.msra.mxu0 %v1540
        %v1542 = vand.u32 %v736, 4294901760
        %1543 = vmatprep.subr.mxu0 %v1542
        %v1544 = vand.u32 %v735, 4294901760
        %1545 = vmatpush1.msra.mxu0 %v1544
        %v1546 = vand.u32 %v738, 4294901760
        %1547 = vmatprep.subr.mxu0 %v1546
        %v1548 = vand.u32 %v737, 4294901760
        %1549 = vmatpush1.msra.mxu0 %v1548
        %v1550 = vand.u32 %v740, 4294901760
        %1551 = vmatprep.subr.mxu0 %v1550
        %v1552 = vand.u32 %v739, 4294901760
        %1553 = vmatpush1.msra.mxu0 %v1552
        %v1554 = vand.u32 %v742, 4294901760
        %1555 = vmatprep.subr.mxu0 %v1554
        %v1556 = vand.u32 %v741, 4294901760
        %1557 = vmatpush1.msra.mxu0 %v1556
        %v1558 = vand.u32 %v744, 4294901760
        %1559 = vmatprep.subr.mxu0 %v1558
        %v1560 = vand.u32 %v743, 4294901760
        %1561 = vmatpush1.msra.mxu0 %v1560
        %v1562 = vand.u32 %v746, 4294901760
        %1563 = vmatprep.subr.mxu0 %v1562
        %v1564 = vand.u32 %v745, 4294901760
        %1565 = vmatpush1.msra.mxu0 %v1564
        %v1566 = vand.u32 %v748, 4294901760
        %1567 = vmatprep.subr.mxu0 %v1566
        %v1568 = vand.u32 %v747, 4294901760
        %1569 = vmatpush1.msra.mxu0 %v1568
        %v1570 = vand.u32 %v750, 4294901760
        %1571 = vmatprep.subr.mxu0 %v1570
        %v1572 = vand.u32 %v749, 4294901760
        %1573 = vmatpush1.msra.mxu0 %v1572
        %v1574 = vand.u32 %v752, 4294901760
        %1575 = vmatprep.subr.mxu0 %v1574
        %v1576 = vand.u32 %v751, 4294901760
        %1577 = vmatpush1.msra.mxu0 %v1576
        %v1578 = vand.u32 %v754, 4294901760
        %1579 = vmatprep.subr.mxu0 %v1578
        %v1580 = vand.u32 %v753, 4294901760
        %1581 = vmatpush1.msra.mxu0 %v1580
        %v1582 = vand.u32 %v756, 4294901760
        %1583 = vmatprep.subr.mxu0 %v1582
        %v1584 = vand.u32 %v755, 4294901760
        %1585 = vmatpush1.msra.mxu0 %v1584
        %v1586 = vand.u32 %v758, 4294901760
        %1587 = vmatprep.subr.mxu0 %v1586
        %v1588 = vand.u32 %v757, 4294901760
        %1589 = vmatpush1.msra.mxu0 %v1588
        %v1590 = vand.u32 %v760, 4294901760
        %1591 = vmatprep.subr.mxu0 %v1590
        %v1592 = vand.u32 %v759, 4294901760
        %1593 = vmatpush1.msra.mxu0 %v1592
        %v1594 = vand.u32 %v762, 4294901760
        %1595 = vmatprep.subr.mxu0 %v1594
        %v1596 = vand.u32 %v761, 4294901760
        %1597 = vmatpush1.msra.mxu0 %v1596
        %v1598 = vand.u32 %v764, 4294901760
        %1599 = vmatprep.subr.mxu0 %v1598
        %v1600 = vand.u32 %v763, 4294901760
        %1601 = vmatpush1.msra.mxu0 %v1600
        %v1602 = vand.u32 %v766, 4294901760
        %1603 = vmatprep.subr.mxu0 %v1602
        %v1604 = vand.u32 %v765, 4294901760
        %1605 = vmatpush1.msra.mxu0 %v1604
        %v1606 = vand.u32 %v768, 4294901760
        %1607 = vmatprep.subr.mxu0 %v1606
        %v1608 = vand.u32 %v767, 4294901760
        %1609 = vmatpush1.msra.mxu0 %v1608
        %v1610 = vand.u32 %v770, 4294901760
        %1611 = vmatprep.subr.mxu0 %v1610
        %v1612 = vand.u32 %v769, 4294901760
        %1613 = vmatpush1.msra.mxu0 %v1612
        %v1614 = vand.u32 %v772, 4294901760
        %1615 = vmatprep.subr.mxu0 %v1614
        %v1616 = vand.u32 %v771, 4294901760
        %1617 = vmatpush1.msra.mxu0 %v1616
        %v1618 = vand.u32 %v774, 4294901760
        %1619 = vmatprep.subr.mxu0 %v1618
        %v1620 = vand.u32 %v773, 4294901760
        %1621 = vmatpush1.msra.mxu0 %v1620
        %v1622 = vand.u32 %v776, 4294901760
        %1623 = vmatprep.subr.mxu0 %v1622
        %v1624 = vand.u32 %v775, 4294901760
        %1625 = vmatpush1.msra.mxu0 %v1624
        %v1626 = vand.u32 %v778, 4294901760
        %1627 = vmatprep.subr.mxu0 %v1626
        %v1628 = vand.u32 %v777, 4294901760
        %1629 = vmatpush1.msra.mxu0 %v1628
        %v1630 = vand.u32 %v780, 4294901760
        %1631 = vmatprep.subr.mxu0 %v1630
        %v1632 = vand.u32 %v779, 4294901760
        %1633 = vmatpush1.msra.mxu0 %v1632
        %v1634 = vand.u32 %v782, 4294901760
        %1635 = vmatprep.subr.mxu0 %v1634
        %v1636 = vand.u32 %v781, 4294901760
        %1637 = vmatpush1.msra.mxu0 %v1636
        %1638 = vmatprep.subr.mxu0 0.0
        %1639 = vmatpush1.msra.mxu0 0.0
        %v1640 = vand.u32 %v787, 4294901760
        %v1641 = vsub.f32 %v787, %v1640
        %v1642 = vand.u32 %v1641, 4294901760
        %1643 = vmatprep.mubr.f32.mxu0 %v1642
        %v1644 = vand.u32 %v720, 4294901760
        %v1645 = vsub.f32 %v720, %v1644
        %v1646 = vand.u32 %v1645, 4294901760
        %1647 = vmatmul.mubr.f32.gmra.mrb[0].mxu0 %v1646
        %v1648 = vpop.f32.mrb[0].mxu0
        %v1649 = vadd.f32 %v1510, %v1648
        %v1650 = vpop.f32.mrb[0].mxu0
        %v1651 = vadd.f32 %v1512, %v1650
        %1652 = vdwg.mxu0
        %v1653 = vand.u32 %v722, 4294901760
        %v1654 = vsub.f32 %v722, %v1653
        %v1655 = vand.u32 %v1654, 4294901760
        %1656 = vmatprep.subr.mxu0 %v1655
        %v1657 = vand.u32 %v721, 4294901760
        %v1658 = vsub.f32 %v721, %v1657
        %v1659 = vand.u32 %v1658, 4294901760
        %1660 = vmatpush1.msra.mxu0 %v1659
        %v1661 = vand.u32 %v724, 4294901760
        %v1662 = vsub.f32 %v724, %v1661
        %v1663 = vand.u32 %v1662, 4294901760
        %1664 = vmatprep.subr.mxu0 %v1663
        %v1665 = vand.u32 %v723, 4294901760
        %v1666 = vsub.f32 %v723, %v1665
        %v1667 = vand.u32 %v1666, 4294901760
        %1668 = vmatpush1.msra.mxu0 %v1667
        %v1669 = vand.u32 %v726, 4294901760
        %v1670 = vsub.f32 %v726, %v1669
        %v1671 = vand.u32 %v1670, 4294901760
        %1672 = vmatprep.subr.mxu0 %v1671
        %v1673 = vand.u32 %v725, 4294901760
        %v1674 = vsub.f32 %v725, %v1673
        %v1675 = vand.u32 %v1674, 4294901760
        %1676 = vmatpush1.msra.mxu0 %v1675
        %v1677 = vand.u32 %v728, 4294901760
        %v1678 = vsub.f32 %v728, %v1677
        %v1679 = vand.u32 %v1678, 4294901760
        %1680 = vmatprep.subr.mxu0 %v1679
        %v1681 = vand.u32 %v727, 4294901760
        %v1682 = vsub.f32 %v727, %v1681
        %v1683 = vand.u32 %v1682, 4294901760
        %1684 = vmatpush1.msra.mxu0 %v1683
        %v1685 = vand.u32 %v730, 4294901760
        %v1686 = vsub.f32 %v730, %v1685
        %v1687 = vand.u32 %v1686, 4294901760
        %1688 = vmatprep.subr.mxu0 %v1687
        %v1689 = vand.u32 %v729, 4294901760
        %v1690 = vsub.f32 %v729, %v1689
        %v1691 = vand.u32 %v1690, 4294901760
        %1692 = vmatpush1.msra.mxu0 %v1691
        %v1693 = vand.u32 %v732, 4294901760
        %v1694 = vsub.f32 %v732, %v1693
        %v1695 = vand.u32 %v1694, 4294901760
        %1696 = vmatprep.subr.mxu0 %v1695
        %v1697 = vand.u32 %v731, 4294901760
        %v1698 = vsub.f32 %v731, %v1697
        %v1699 = vand.u32 %v1698, 4294901760
        %1700 = vmatpush1.msra.mxu0 %v1699
        %v1701 = vand.u32 %v734, 4294901760
        %v1702 = vsub.f32 %v734, %v1701
        %v1703 = vand.u32 %v1702, 4294901760
        %1704 = vmatprep.subr.mxu0 %v1703
        %v1705 = vand.u32 %v733, 4294901760
        %v1706 = vsub.f32 %v733, %v1705
        %v1707 = vand.u32 %v1706, 4294901760
        %1708 = vmatpush1.msra.mxu0 %v1707
        %v1709 = vand.u32 %v736, 4294901760
        %v1710 = vsub.f32 %v736, %v1709
        %v1711 = vand.u32 %v1710, 4294901760
        %1712 = vmatprep.subr.mxu0 %v1711
        %v1713 = vand.u32 %v735, 4294901760
        %v1714 = vsub.f32 %v735, %v1713
        %v1715 = vand.u32 %v1714, 4294901760
        %1716 = vmatpush1.msra.mxu0 %v1715
        %v1717 = vand.u32 %v738, 4294901760
        %v1718 = vsub.f32 %v738, %v1717
        %v1719 = vand.u32 %v1718, 4294901760
        %1720 = vmatprep.subr.mxu0 %v1719
        %v1721 = vand.u32 %v737, 4294901760
        %v1722 = vsub.f32 %v737, %v1721
        %v1723 = vand.u32 %v1722, 4294901760
        %1724 = vmatpush1.msra.mxu0 %v1723
        %v1725 = vand.u32 %v740, 4294901760
        %v1726 = vsub.f32 %v740, %v1725
        %v1727 = vand.u32 %v1726, 4294901760
        %1728 = vmatprep.subr.mxu0 %v1727
        %v1729 = vand.u32 %v739, 4294901760
        %v1730 = vsub.f32 %v739, %v1729
        %v1731 = vand.u32 %v1730, 4294901760
        %1732 = vmatpush1.msra.mxu0 %v1731
        %v1733 = vand.u32 %v742, 4294901760
        %v1734 = vsub.f32 %v742, %v1733
        %v1735 = vand.u32 %v1734, 4294901760
        %1736 = vmatprep.subr.mxu0 %v1735
        %v1737 = vand.u32 %v741, 4294901760
        %v1738 = vsub.f32 %v741, %v1737
        %v1739 = vand.u32 %v1738, 4294901760
        %1740 = vmatpush1.msra.mxu0 %v1739
        %v1741 = vand.u32 %v744, 4294901760
        %v1742 = vsub.f32 %v744, %v1741
        %v1743 = vand.u32 %v1742, 4294901760
        %1744 = vmatprep.subr.mxu0 %v1743
        %v1745 = vand.u32 %v743, 4294901760
        %v1746 = vsub.f32 %v743, %v1745
        %v1747 = vand.u32 %v1746, 4294901760
        %1748 = vmatpush1.msra.mxu0 %v1747
        %v1749 = vand.u32 %v746, 4294901760
        %v1750 = vsub.f32 %v746, %v1749
        %v1751 = vand.u32 %v1750, 4294901760
        %1752 = vmatprep.subr.mxu0 %v1751
        %v1753 = vand.u32 %v745, 4294901760
        %v1754 = vsub.f32 %v745, %v1753
        %v1755 = vand.u32 %v1754, 4294901760
        %1756 = vmatpush1.msra.mxu0 %v1755
        %v1757 = vand.u32 %v748, 4294901760
        %v1758 = vsub.f32 %v748, %v1757
        %v1759 = vand.u32 %v1758, 4294901760
        %1760 = vmatprep.subr.mxu0 %v1759
        %v1761 = vand.u32 %v747, 4294901760
        %v1762 = vsub.f32 %v747, %v1761
        %v1763 = vand.u32 %v1762, 4294901760
        %1764 = vmatpush1.msra.mxu0 %v1763
        %v1765 = vand.u32 %v750, 4294901760
        %v1766 = vsub.f32 %v750, %v1765
        %v1767 = vand.u32 %v1766, 4294901760
        %1768 = vmatprep.subr.mxu0 %v1767
        %v1769 = vand.u32 %v749, 4294901760
        %v1770 = vsub.f32 %v749, %v1769
        %v1771 = vand.u32 %v1770, 4294901760
        %1772 = vmatpush1.msra.mxu0 %v1771
        %v1773 = vand.u32 %v752, 4294901760
        %v1774 = vsub.f32 %v752, %v1773
        %v1775 = vand.u32 %v1774, 4294901760
        %1776 = vmatprep.subr.mxu0 %v1775
        %v1777 = vand.u32 %v751, 4294901760
        %v1778 = vsub.f32 %v751, %v1777
        %v1779 = vand.u32 %v1778, 4294901760
        %1780 = vmatpush1.msra.mxu0 %v1779
        %v1781 = vand.u32 %v754, 4294901760
        %v1782 = vsub.f32 %v754, %v1781
        %v1783 = vand.u32 %v1782, 4294901760
        %1784 = vmatprep.subr.mxu0 %v1783
        %v1785 = vand.u32 %v753, 4294901760
        %v1786 = vsub.f32 %v753, %v1785
        %v1787 = vand.u32 %v1786, 4294901760
        %1788 = vmatpush1.msra.mxu0 %v1787
        %v1789 = vand.u32 %v756, 4294901760
        %v1790 = vsub.f32 %v756, %v1789
        %v1791 = vand.u32 %v1790, 4294901760
        %1792 = vmatprep.subr.mxu0 %v1791
        %v1793 = vand.u32 %v755, 4294901760
        %v1794 = vsub.f32 %v755, %v1793
        %v1795 = vand.u32 %v1794, 4294901760
        %1796 = vmatpush1.msra.mxu0 %v1795
        %v1797 = vand.u32 %v758, 4294901760
        %v1798 = vsub.f32 %v758, %v1797
        %v1799 = vand.u32 %v1798, 4294901760
        %1800 = vmatprep.subr.mxu0 %v1799
        %v1801 = vand.u32 %v757, 4294901760
        %v1802 = vsub.f32 %v757, %v1801
        %v1803 = vand.u32 %v1802, 4294901760
        %1804 = vmatpush1.msra.mxu0 %v1803
        %v1805 = vand.u32 %v760, 4294901760
        %v1806 = vsub.f32 %v760, %v1805
        %v1807 = vand.u32 %v1806, 4294901760
        %1808 = vmatprep.subr.mxu0 %v1807
        %v1809 = vand.u32 %v759, 4294901760
        %v1810 = vsub.f32 %v759, %v1809
        %v1811 = vand.u32 %v1810, 4294901760
        %1812 = vmatpush1.msra.mxu0 %v1811
        %v1813 = vand.u32 %v762, 4294901760
        %v1814 = vsub.f32 %v762, %v1813
        %v1815 = vand.u32 %v1814, 4294901760
        %1816 = vmatprep.subr.mxu0 %v1815
        %v1817 = vand.u32 %v761, 4294901760
        %v1818 = vsub.f32 %v761, %v1817
        %v1819 = vand.u32 %v1818, 4294901760
        %1820 = vmatpush1.msra.mxu0 %v1819
        %v1821 = vand.u32 %v764, 4294901760
        %v1822 = vsub.f32 %v764, %v1821
        %v1823 = vand.u32 %v1822, 4294901760
        %1824 = vmatprep.subr.mxu0 %v1823
        %v1825 = vand.u32 %v763, 4294901760
        %v1826 = vsub.f32 %v763, %v1825
        %v1827 = vand.u32 %v1826, 4294901760
        %1828 = vmatpush1.msra.mxu0 %v1827
        %v1829 = vand.u32 %v766, 4294901760
        %v1830 = vsub.f32 %v766, %v1829
        %v1831 = vand.u32 %v1830, 4294901760
        %1832 = vmatprep.subr.mxu0 %v1831
        %v1833 = vand.u32 %v765, 4294901760
        %v1834 = vsub.f32 %v765, %v1833
        %v1835 = vand.u32 %v1834, 4294901760
        %1836 = vmatpush1.msra.mxu0 %v1835
        %v1837 = vand.u32 %v768, 4294901760
        %v1838 = vsub.f32 %v768, %v1837
        %v1839 = vand.u32 %v1838, 4294901760
        %1840 = vmatprep.subr.mxu0 %v1839
        %v1841 = vand.u32 %v767, 4294901760
        %v1842 = vsub.f32 %v767, %v1841
        %v1843 = vand.u32 %v1842, 4294901760
        %1844 = vmatpush1.msra.mxu0 %v1843
        %v1845 = vand.u32 %v770, 4294901760
        %v1846 = vsub.f32 %v770, %v1845
        %v1847 = vand.u32 %v1846, 4294901760
        %1848 = vmatprep.subr.mxu0 %v1847
        %v1849 = vand.u32 %v769, 4294901760
        %v1850 = vsub.f32 %v769, %v1849
        %v1851 = vand.u32 %v1850, 4294901760
        %1852 = vmatpush1.msra.mxu0 %v1851
        %v1853 = vand.u32 %v772, 4294901760
        %v1854 = vsub.f32 %v772, %v1853
        %v1855 = vand.u32 %v1854, 4294901760
        %1856 = vmatprep.subr.mxu0 %v1855
        %v1857 = vand.u32 %v771, 4294901760
        %v1858 = vsub.f32 %v771, %v1857
        %v1859 = vand.u32 %v1858, 4294901760
        %1860 = vmatpush1.msra.mxu0 %v1859
        %v1861 = vand.u32 %v774, 4294901760
        %v1862 = vsub.f32 %v774, %v1861
        %v1863 = vand.u32 %v1862, 4294901760
        %1864 = vmatprep.subr.mxu0 %v1863
        %v1865 = vand.u32 %v773, 4294901760
        %v1866 = vsub.f32 %v773, %v1865
        %v1867 = vand.u32 %v1866, 4294901760
        %1868 = vmatpush1.msra.mxu0 %v1867
        %v1869 = vand.u32 %v776, 4294901760
        %v1870 = vsub.f32 %v776, %v1869
        %v1871 = vand.u32 %v1870, 4294901760
        %1872 = vmatprep.subr.mxu0 %v1871
        %v1873 = vand.u32 %v775, 4294901760
        %v1874 = vsub.f32 %v775, %v1873
        %v1875 = vand.u32 %v1874, 4294901760
        %1876 = vmatpush1.msra.mxu0 %v1875
        %v1877 = vand.u32 %v778, 4294901760
        %v1878 = vsub.f32 %v778, %v1877
        %v1879 = vand.u32 %v1878, 4294901760
        %1880 = vmatprep.subr.mxu0 %v1879
        %v1881 = vand.u32 %v777, 4294901760
        %v1882 = vsub.f32 %v777, %v1881
        %v1883 = vand.u32 %v1882, 4294901760
        %1884 = vmatpush1.msra.mxu0 %v1883
        %v1885 = vand.u32 %v780, 4294901760
        %v1886 = vsub.f32 %v780, %v1885
        %v1887 = vand.u32 %v1886, 4294901760
        %1888 = vmatprep.subr.mxu0 %v1887
        %v1889 = vand.u32 %v779, 4294901760
        %v1890 = vsub.f32 %v779, %v1889
        %v1891 = vand.u32 %v1890, 4294901760
        %1892 = vmatpush1.msra.mxu0 %v1891
        %v1893 = vand.u32 %v782, 4294901760
        %v1894 = vsub.f32 %v782, %v1893
        %v1895 = vand.u32 %v1894, 4294901760
        %1896 = vmatprep.subr.mxu0 %v1895
        %v1897 = vand.u32 %v781, 4294901760
        %v1898 = vsub.f32 %v781, %v1897
        %v1899 = vand.u32 %v1898, 4294901760
        %1900 = vmatpush1.msra.mxu0 %v1899
        %1901 = vmatprep.subr.mxu0 0.0
        %1902 = vmatpush1.msra.mxu0 0.0
        %v1903 = vand.u32 %v787, 4294901760
        %1904 = vmatprep.mubr.f32.mxu0 %v1903
        %v1905 = vand.u32 %v720, 4294901760
        %1906 = vmatmul.mubr.f32.gmra.mrb[0].mxu0 %v1905
        %v1907 = vpop.f32.mrb[0].mxu0
        %v1908 = vadd.f32 %v1649, %v1907
        %v1909 = vpop.f32.mrb[0].mxu0
        %v1910 = vadd.f32 %v1651, %v1909
        %1911 = vdwg.mxu0
        %v1912 = vand.u32 %v722, 4294901760
        %1913 = vmatprep.subr.mxu0 %v1912
        %v1914 = vand.u32 %v721, 4294901760
        %1915 = vmatpush1.msra.mxu0 %v1914
        %v1916 = vand.u32 %v724, 4294901760
        %1917 = vmatprep.subr.mxu0 %v1916
        %v1918 = vand.u32 %v723, 4294901760
        %1919 = vmatpush1.msra.mxu0 %v1918
        %v1920 = vand.u32 %v726, 4294901760
        %1921 = vmatprep.subr.mxu0 %v1920
        %v1922 = vand.u32 %v725, 4294901760
        %1923 = vmatpush1.msra.mxu0 %v1922
        %v1924 = vand.u32 %v728, 4294901760
        %1925 = vmatprep.subr.mxu0 %v1924
        %v1926 = vand.u32 %v727, 4294901760
        %1927 = vmatpush1.msra.mxu0 %v1926
        %v1928 = vand.u32 %v730, 4294901760
        %1929 = vmatprep.subr.mxu0 %v1928
        %v1930 = vand.u32 %v729, 4294901760
        %1931 = vmatpush1.msra.mxu0 %v1930
        %v1932 = vand.u32 %v732, 4294901760
        %1933 = vmatprep.subr.mxu0 %v1932
        %v1934 = vand.u32 %v731, 4294901760
        %1935 = vmatpush1.msra.mxu0 %v1934
        %v1936 = vand.u32 %v734, 4294901760
        %1937 = vmatprep.subr.mxu0 %v1936
        %v1938 = vand.u32 %v733, 4294901760
        %1939 = vmatpush1.msra.mxu0 %v1938
        %v1940 = vand.u32 %v736, 4294901760
        %1941 = vmatprep.subr.mxu0 %v1940
        %v1942 = vand.u32 %v735, 4294901760
        %1943 = vmatpush1.msra.mxu0 %v1942
        %v1944 = vand.u32 %v738, 4294901760
        %1945 = vmatprep.subr.mxu0 %v1944
        %v1946 = vand.u32 %v737, 4294901760
        %1947 = vmatpush1.msra.mxu0 %v1946
        %v1948 = vand.u32 %v740, 4294901760
        %1949 = vmatprep.subr.mxu0 %v1948
        %v1950 = vand.u32 %v739, 4294901760
        %1951 = vmatpush1.msra.mxu0 %v1950
        %v1952 = vand.u32 %v742, 4294901760
        %1953 = vmatprep.subr.mxu0 %v1952
        %v1954 = vand.u32 %v741, 4294901760
        %1955 = vmatpush1.msra.mxu0 %v1954
        %v1956 = vand.u32 %v744, 4294901760
        %1957 = vmatprep.subr.mxu0 %v1956
        %v1958 = vand.u32 %v743, 4294901760
        %1959 = vmatpush1.msra.mxu0 %v1958
        %v1960 = vand.u32 %v746, 4294901760
        %1961 = vmatprep.subr.mxu0 %v1960
        %v1962 = vand.u32 %v745, 4294901760
        %1963 = vmatpush1.msra.mxu0 %v1962
        %v1964 = vand.u32 %v748, 4294901760
        %1965 = vmatprep.subr.mxu0 %v1964
        %v1966 = vand.u32 %v747, 4294901760
        %1967 = vmatpush1.msra.mxu0 %v1966
        %v1968 = vand.u32 %v750, 4294901760
        %1969 = vmatprep.subr.mxu0 %v1968
        %v1970 = vand.u32 %v749, 4294901760
        %1971 = vmatpush1.msra.mxu0 %v1970
        %v1972 = vand.u32 %v752, 4294901760
        %1973 = vmatprep.subr.mxu0 %v1972
        %v1974 = vand.u32 %v751, 4294901760
        %1975 = vmatpush1.msra.mxu0 %v1974
        %v1976 = vand.u32 %v754, 4294901760
        %1977 = vmatprep.subr.mxu0 %v1976
        %v1978 = vand.u32 %v753, 4294901760
        %1979 = vmatpush1.msra.mxu0 %v1978
        %v1980 = vand.u32 %v756, 4294901760
        %1981 = vmatprep.subr.mxu0 %v1980
        %v1982 = vand.u32 %v755, 4294901760
        %1983 = vmatpush1.msra.mxu0 %v1982
        %v1984 = vand.u32 %v758, 4294901760
        %1985 = vmatprep.subr.mxu0 %v1984
        %v1986 = vand.u32 %v757, 4294901760
        %1987 = vmatpush1.msra.mxu0 %v1986
        %v1988 = vand.u32 %v760, 4294901760
        %1989 = vmatprep.subr.mxu0 %v1988
        %v1990 = vand.u32 %v759, 4294901760
        %1991 = vmatpush1.msra.mxu0 %v1990
        %v1992 = vand.u32 %v762, 4294901760
        %1993 = vmatprep.subr.mxu0 %v1992
        %v1994 = vand.u32 %v761, 4294901760
        %1995 = vmatpush1.msra.mxu0 %v1994
        %v1996 = vand.u32 %v764, 4294901760
        %1997 = vmatprep.subr.mxu0 %v1996
        %v1998 = vand.u32 %v763, 4294901760
        %1999 = vmatpush1.msra.mxu0 %v1998
        %v2000 = vand.u32 %v766, 4294901760
        %2001 = vmatprep.subr.mxu0 %v2000
        %v2002 = vand.u32 %v765, 4294901760
        %2003 = vmatpush1.msra.mxu0 %v2002
        %v2004 = vand.u32 %v768, 4294901760
        %2005 = vmatprep.subr.mxu0 %v2004
        %v2006 = vand.u32 %v767, 4294901760
        %2007 = vmatpush1.msra.mxu0 %v2006
        %v2008 = vand.u32 %v770, 4294901760
        %2009 = vmatprep.subr.mxu0 %v2008
        %v2010 = vand.u32 %v769, 4294901760
        %2011 = vmatpush1.msra.mxu0 %v2010
        %v2012 = vand.u32 %v772, 4294901760
        %2013 = vmatprep.subr.mxu0 %v2012
        %v2014 = vand.u32 %v771, 4294901760
        %2015 = vmatpush1.msra.mxu0 %v2014
        %v2016 = vand.u32 %v774, 4294901760
        %2017 = vmatprep.subr.mxu0 %v2016
        %v2018 = vand.u32 %v773, 4294901760
        %2019 = vmatpush1.msra.mxu0 %v2018
        %v2020 = vand.u32 %v776, 4294901760
        %2021 = vmatprep.subr.mxu0 %v2020
        %v2022 = vand.u32 %v775, 4294901760
        %2023 = vmatpush1.msra.mxu0 %v2022
        %v2024 = vand.u32 %v778, 4294901760
        %2025 = vmatprep.subr.mxu0 %v2024
        %v2026 = vand.u32 %v777, 4294901760
        %2027 = vmatpush1.msra.mxu0 %v2026
        %v2028 = vand.u32 %v780, 4294901760
        %2029 = vmatprep.subr.mxu0 %v2028
        %v2030 = vand.u32 %v779, 4294901760
        %2031 = vmatpush1.msra.mxu0 %v2030
        %v2032 = vand.u32 %v782, 4294901760
        %2033 = vmatprep.subr.mxu0 %v2032
        %v2034 = vand.u32 %v781, 4294901760
        %2035 = vmatpush1.msra.mxu0 %v2034
        %2036 = vmatprep.subr.mxu0 0.0
        %2037 = vmatpush1.msra.mxu0 0.0
        %v2038 = vand.u32 %v787, 4294901760
        %2039 = vmatprep.mubr.f32.mxu0 %v2038
        %v2040 = vand.u32 %v720, 4294901760
        %2041 = vmatmul.mubr.f32.gmra.mrb[0].mxu0 %v2040
        %v2042 = vpop.f32.mrb[0].mxu0
        %v2043 = vadd.f32 %v1908, %v2042
        %v2044 = vpop.f32.mrb[0].mxu0
        %v2045 = vadd.f32 %v1910, %v2044
        %2046 = vdwg.mxu0
        %2047 = vst [vmem:[%s256] sm:$0xf] %v2043
        %2048 = vst [vmem:[%s256 + $0x8] sm:$0xf] %v2045
        %v2049 = vcombine.low %v257, %v257
        %2051 = vst [vmem:[%s256] sm:$0xf0] %v2049
        %2052 = vst [vmem:[%s256 + $0x8] sm:$0xf0] %v257
        %s2053 = sand.u32 %s142, 1
        %s2054 = scalar_lea.sflag [#allocation5], %s2053
        %s2055 = sand.u32 %s142, 1
        %s2056 = smul.addr %s2055, 16
        %s2057 = scalar_lea.vmem [#allocation8], %s2056
        // Predicated region
        $region49: #{tpu_custom_call.1} parent=39 // pred_check
          %p2058 = pneg %p152
        $region50: #{tpu_custom_call.1} parent=39 // pred_check_branch
          %2060 = sbr.rel (%p2058) target = $region52
        $region51: #{tpu_custom_call.1} parent=39 // pred_region
          %s2062 = ssub.s32 256, 256
          %2063 = vsyncadd %s2054, %s2062
          %s2064 = smul.addr %s24, 2
          %s2065 = smul.addr %s2064, 128
          %s2066 = scalar_lea.hbm %s5, %s2065
          %s2068 = sshll.u32 %s2057, 4
          %s2069 = int_to_ptr.vmem [resolvable:$true] %s2068
          %2071 = dma.vmem_to_hbm [thread:$0]  %s2069, 256, %s2066, %s2054
        $region52: #{tpu_custom_call.1} parent=39 // pred_fallthru
          _
      $region40: #{tpu_custom_call.1} parent=5 // pred_fallthru
        _
      %p2072 = scmp.le.s32.totalorder 2, %s19
      // Predicated region
      $region53: #{tpu_custom_call.1} parent=5 // pred_check
        %p2073 = pneg %p2072
      $region54: #{tpu_custom_call.1} parent=5 // pred_check_branch
        %2075 = sbr.rel (%p2073) target = $region56
      $region55: #{tpu_custom_call.1} parent=5 // pred_region
        %s2076 = ssub.s32 %s19, 2
        // Predicated region
        $region57: #{tpu_custom_call.1} parent=55 // pred_check
          %p2077 = pneg %p158
        $region58: #{tpu_custom_call.1} parent=55 // pred_check_branch
          %2079 = sbr.rel (%p2077) target = $region60
        $region59: #{tpu_custom_call.1} parent=55 // pred_region
          %s2080 = sand.u32 %s143, 1
          %s2081 = scalar_lea.sflag [#allocation5], %s2080
          %s2082 = sand.u32 %s143, 1
          %s2083 = smul.addr %s2082, 16
          %s2084 = scalar_lea.vmem [#allocation8], %s2083
          %2085 = dma.done %s2081, 256
        $region60: #{tpu_custom_call.1} parent=55 // pred_fallthru
          _
      $region56: #{tpu_custom_call.1} parent=5 // pred_fallthru
        _
    $region6: #{tpu_custom_call.1} parent=1 // loop_footer
      %s23 = sadd.s32 1, %s19
    $region7: #{tpu_custom_call.1} parent=1 // loop_footer_branch
      %18 = sbr.rel target = $region3
    $region8: #{tpu_custom_call.1} parent=1 // loop_exit
      _
    %2086 = vsyncpa [#allocation4], 1
    %s2087 = scalar_lea.sflag [#allocation4], 1
    %2088 = vsyncpa %s2087, 1
    %2089 = vsyncpa [#allocation7], 1
    %2090 = vsyncpa [#allocation5], 1
    %s2091 = scalar_lea.sflag [#allocation5], 1
    %2092 = vsyncpa %s2091, 1

</llo_original>
